<compile_context>
chip_gen: v5e
topology: v5e:2x2
jax: 0.10.0
libtpu: 0.0.40
codegen_flags: <defaults>
</compile_context>

<pallas_src>
import functools

import jax
import jax.numpy as jnp
from jax import lax
from jax.experimental import pallas as pl
from jax.experimental.pallas import tpu as pltpu


# ------------------------------ fused kernel ------------------------------- #

def _fused_channel_attention_kernel(H, W, x_ref, mask_ref, w1_ref, shift1_ref,
                                    alpha_ref, w2_ref, shift2_ref, w2a_ref,
                                    w2b_ref, w3a_ref, w3b_ref, b3_ref,
                                    out_ref, epad_ref, patch_ref):
    # x_ref:    (1, C, H*W)   one batch element, spatial flattened on lanes
    # mask_ref: (1, Lp)       1.0 at interior padded coords, 0.0 on the halo
    # w1/w2:    (C, 9C)       3x3 conv weights (BN scale + bias folded)
    # shift1/2, alpha, b3: (C, 1) per-channel columns
    # w2a: (R, C)  w2b: (C, R)  squeeze-excite 1x1 weights (no bias)
    # w3a/w3b: (C, C)          conv3 1x1 weight split over the concat halves
    # epad_ref:  (C, LE) VMEM  flattened zero-padded image + slack for taps
    # patch_ref: (9C, Lp) VMEM im2col patch
    C = out_ref.shape[1]
    HW = H * W
    Hp, Wp = H + 2, W + 2
    Lp = Hp * Wp                      # padded image, flattened over lanes
    EXT = 128                         # slack (>= Wp+1) so tap slices stay in-bounds;
    LE = Lp + 2 * EXT                 # 128 keeps the re-pad store lane-aligned

    def conv3x3(w_ref, shift_ref):
        # im2col: every 3x3 tap is a static lane-shifted view of the padded
        # strip; build the (9C, Lp) patch once, then a single MXU matmul.
        for kh in range(3):
            for kw in range(3):
                t = kh * 3 + kw
                s = EXT + (kh - 1) * Wp + (kw - 1)
                patch_ref[t * C:(t + 1) * C, :] = epad_ref[:, s:s + Lp]
        return (jnp.dot(w_ref[...], patch_ref[...],
                        preferred_element_type=jnp.float32)
                + shift_ref[...])                               # (C, Lp)

    x = x_ref[0]                                                # (C, HW)
    mask = mask_ref[...]                                        # (1, Lp)

    # ---- in-kernel halo padding of x into the flat extended buffer -------- #
    epad_ref[...] = jnp.zeros((C, LE), jnp.float32)
    for i in range(H):                                          # static offsets
        dst = EXT + (i + 1) * Wp + 1
        epad_ref[:, dst:dst + W] = x[:, i * W:(i + 1) * W]

    # ---- conv1[0:3]: 3x3 conv (+bias, BN folded) + PReLU ------------------- #
    h = conv3x3(w1_ref, shift1_ref)
    h = jnp.where(h >= 0.0, h, alpha_ref[...] * h)

    # ---- conv1[3:5]: 3x3 conv (+bias, BN folded) --------------------------- #
    # Re-pad: zero the (invalid) halo ring of h and put it back into the
    # extended buffer (the +/-EXT end strips are still zero from the init).
    epad_ref[:, EXT:EXT + Lp] = h * mask                        # lane-aligned store
    y = conv3x3(w2_ref, shift2_ref)                             # halo cols = garbage

    # ---- global avg / max pooling over the valid interior ------------------ #
    avg = jnp.sum(y * mask, axis=1, keepdims=True) * (1.0 / HW)       # (C, 1)
    mx = jnp.max(jnp.where(mask > 0.5, y, -jnp.inf), axis=1, keepdims=True)

    # ---- conv2 (squeeze-excite): 1x1 -> ReLU -> 1x1 -> Sigmoid -------------- #
    # Both branches share weights, so run them as one (C, 2) column batch.
    v2 = jnp.concatenate([avg, mx], axis=1)                     # (C, 2)
    hh = jnp.maximum(jnp.dot(w2a_ref[...], v2,
                             preferred_element_type=jnp.float32), 0.0)   # (R, 2)
    sg = jnp.dot(w2b_ref[...], hh, preferred_element_type=jnp.float32)   # (C, 2)
    g = 1.0 / (1.0 + jnp.exp(-sg))                              # gates, columns

    # Column gates -> row gates via an eye-masked sublane reduce (no transpose).
    rows = lax.broadcasted_iota(jnp.int32, (C, C), 0)
    cols = lax.broadcasted_iota(jnp.int32, (C, C), 1)
    eye = (rows == cols).astype(jnp.float32)
    a_avg = jnp.sum(eye * g[:, 0:1], axis=0, keepdims=True)     # (1, C)
    a_max = jnp.sum(eye * g[:, 1:2], axis=0, keepdims=True)     # (1, C)

    # ---- conv3: per-channel gates folded into the 1x1 weight --------------- #
    #   w3a @ (a_avg*x) + w3b @ (a_max*x) + b3
    # = (w3a*a_avg_row + w3b*a_max_row) @ x + b3   (exact in real arithmetic)
    w_eff = w3a_ref[...] * a_avg + w3b_ref[...] * a_max         # (C, C)
    out = jnp.dot(w_eff, x, preferred_element_type=jnp.float32) + b3_ref[...]
    out_ref[0] = out.astype(out_ref.dtype)


# --------------------------------- wrapper --------------------------------- #

def channel_attention_forward(x_nchw, params):
    """x_nchw: (B, nc, H, W) float32. Returns (B, nc, H, W)."""
    B, C, H, W = x_nchw.shape
    R = params["w_c2a"].shape[0]
    eps = 1e-5
    Hp, Wp = H + 2, W + 2
    Lp = Hp * Wp
    HW = H * W
    EXT = 128
    LE = Lp + 2 * EXT

    # Fold conv bias + BatchNorm (eval mode) into the conv weights.
    scale1 = params["bn1_gamma"] / jnp.sqrt(params["bn1_var"] + eps)
    shift1 = (params["b_c1a"] - params["bn1_mean"]) * scale1 + params["bn1_beta"]
    scale2 = params["bn2_gamma"] / jnp.sqrt(params["bn2_var"] + eps)
    shift2 = (params["b_c1b"] - params["bn2_mean"]) * scale2 + params["bn2_beta"]

    # OIHW -> (cout, kh, kw, cin) -> (cout, 9*cin), rows scaled by BN scale.
    def conv_w(w, scale):
        wt = jnp.transpose(w, (0, 2, 3, 1)).reshape(C, 9 * C)
        return (wt * scale[:, None]).astype(jnp.float32)

    w1 = conv_w(params["w_c1a"], scale1)
    w2 = conv_w(params["w_c1b"], scale2)

    # 1x1 conv weights as matrices.
    w2a = params["w_c2a"][:, :, 0, 0]                 # (R, C)
    w2b = params["w_c2b"][:, :, 0, 0]                 # (C, R)
    w3 = params["w_c3"][:, :, 0, 0]                   # (C, 2C)
    w3a = w3[:, :C]                                   # (C, C)  avg branch
    w3b = w3[:, C:]                                   # (C, C)  max branch

    # Interior mask over flattened padded coordinates (constant, tiny).
    mask = jnp.pad(jnp.ones((H, W), jnp.float32),
                   ((1, 1), (1, 1))).reshape(1, Lp)

    x2d = x_nchw.reshape(B, C, HW)                    # NCHW: spatial on lanes

    kernel = functools.partial(_fused_channel_attention_kernel, H, W)

    out = pl.pallas_call(
        kernel,
        out_shape=jax.ShapeDtypeStruct((B, C, HW), jnp.float32),
        grid=(B,),
        in_specs=[
            pl.BlockSpec((1, C, HW), lambda b: (b, 0, 0)),
            pl.BlockSpec((1, Lp), lambda b: (0, 0)),
            pl.BlockSpec((C, 9 * C), lambda b: (0, 0)),
            pl.BlockSpec((C, 1), lambda b: (0, 0)),
            pl.BlockSpec((C, 1), lambda b: (0, 0)),
            pl.BlockSpec((C, 9 * C), lambda b: (0, 0)),
            pl.BlockSpec((C, 1), lambda b: (0, 0)),
            pl.BlockSpec((R, C), lambda b: (0, 0)),
            pl.BlockSpec((C, R), lambda b: (0, 0)),
            pl.BlockSpec((C, C), lambda b: (0, 0)),
            pl.BlockSpec((C, C), lambda b: (0, 0)),
            pl.BlockSpec((C, 1), lambda b: (0, 0)),
        ],
        out_specs=pl.BlockSpec((1, C, HW), lambda b: (b, 0, 0)),
        scratch_shapes=[
            pltpu.VMEM((C, LE), jnp.float32),        # flat padded image strip
            pltpu.VMEM((9 * C, Lp), jnp.float32),    # im2col patch
        ],
        compiler_params=pltpu.CompilerParams(
            dimension_semantics=("parallel",)),
    )(x2d, mask, w1, shift1[:, None], params["prelu_alpha"][:, None],
      w2, shift2[:, None], w2a, w2b, w3a, w3b, params["b_c3"][:, None])

    return out.reshape(B, C, H, W)


# ----------------------- deterministic parameter init ---------------------- #

def init_params(key, nc, number):
    ks = jax.random.split(key, 12)

    def nrm(k, shape, s=0.1):
        return s * jax.random.normal(k, shape, jnp.float32)

    p = {
        "w_c1a": nrm(ks[0], (nc, nc, 3, 3)),      # conv1[0] weight (OIHW)
        "b_c1a": nrm(ks[1], (nc,)),
        "bn1_gamma": 1.0 + nrm(ks[2], (nc,)),
        "bn1_beta": nrm(ks[3], (nc,)),
        "prelu_alpha": jnp.full((nc,), 0.25, jnp.float32),
        "w_c1b": nrm(ks[4], (nc, nc, 3, 3)),      # conv1[3] weight
        "b_c1b": nrm(ks[5], (nc,)),
        "bn2_gamma": 1.0 + nrm(ks[6], (nc,)),
        "bn2_beta": nrm(ks[7], (nc,)),
        "w_c2a": nrm(ks[8], (number, nc, 1, 1)),  # conv2[0], bias=False
        "w_c2b": nrm(ks[9], (nc, number, 1, 1)),  # conv2[2], bias=False
        "w_c3": nrm(ks[10], (nc, 2 * nc, 1, 1)),  # conv3
        "b_c3": nrm(ks[11], (nc,)),
        # BatchNorm running stats (eval mode, freshly initialized)
        "bn1_mean": jnp.zeros((nc,), jnp.float32),
        "bn1_var": jnp.ones((nc,), jnp.float32),
        "bn2_mean": jnp.zeros((nc,), jnp.float32),
        "bn2_var": jnp.ones((nc,), jnp.float32),
    }
    return p


# --------------------------- pure-JAX reference ----------------------------- #

def reference_forward(x, params):
    eps = 1e-5

    def conv3x3(inp, w, b):
        out = lax.conv_general_dilated(
            inp, w, (1, 1), ((1, 1), (1, 1)),
            dimension_numbers=("NCHW", "OIHW", "NCHW"))
        return out + b[None, :, None, None]

    def bn(inp, g, bta, m, v):
        return ((inp - m[None, :, None, None])
                / jnp.sqrt(v[None, :, None, None] + eps)
                * g[None, :, None, None] + bta[None, :, None, None])

    y = conv3x3(x, params["w_c1a"], params["b_c1a"])
    y = bn(y, params["bn1_gamma"], params["bn1_beta"],
           params["bn1_mean"], params["bn1_var"])
    a = params["prelu_alpha"][None, :, None, None]
    y = jnp.where(y >= 0.0, y, a * y)
    y = conv3x3(y, params["w_c1b"], params["b_c1b"])
    y = bn(y, params["bn2_gamma"], params["bn2_beta"],
           params["bn2_mean"], params["bn2_var"])

    avg = jnp.mean(y, axis=(2, 3))                    # (B, C)
    mx = jnp.max(y, axis=(2, 3))
    w2a = params["w_c2a"][:, :, 0, 0]                 # (R, C)
    w2b = params["w_c2b"][:, :, 0, 0]                 # (C, R)

    def se(v):
        h = jnp.maximum(v @ w2a.T, 0.0)
        return jax.nn.sigmoid(h @ w2b.T)

    ca_avg = se(avg)[:, :, None, None] * x
    ca_max = se(mx)[:, :, None, None] * x
    cat = jnp.concatenate([ca_avg, ca_max], axis=1)   # (B, 2C, H, W)
    w3 = params["w_c3"][:, :, 0, 0]                   # (C, 2C)
    out = jnp.einsum("bihw,oi->bohw", cat, w3) + params["b_c3"][None, :, None, None]
    return out


# --------------------------------- main ------------------------------------ #

if __name__ == "__main__":
    B, nc, number, H, W = 2, 8, 4, 16, 16
    key = jax.random.PRNGKey(0)
    kx, kp = jax.random.split(key)
    x = jax.random.normal(kx, (B, nc, H, W), jnp.float32)
    params = init_params(kp, nc, number)

    out = channel_attention_forward(x, params)
    out = jax.block_until_ready(out)
    assert out.shape == (B, nc, H, W)

    ref = reference_forward(x, params)
    err = float(jnp.max(jnp.abs(out - ref)))
    if not err < 1e-3:
        raise AssertionError(f"kernel/reference mismatch: max abs err = {err}")

    print("KERNEL_OK")
</pallas_src>

<mosaic_0001>
module attributes {stable_mosaic.version = 11 : i64} {
  func.func @_fused_channel_attention_kernel(%arg0: i32, %arg1: memref<1x8x256xf32, #tpu.memory_space<vmem>>, %arg2: memref<1x324xf32, #tpu.memory_space<vmem>>, %arg3: memref<8x72xf32, #tpu.memory_space<vmem>>, %arg4: memref<8x1xf32, #tpu.memory_space<vmem>>, %arg5: memref<8x1xf32, #tpu.memory_space<vmem>>, %arg6: memref<8x72xf32, #tpu.memory_space<vmem>>, %arg7: memref<8x1xf32, #tpu.memory_space<vmem>>, %arg8: memref<4x8xf32, #tpu.memory_space<vmem>>, %arg9: memref<8x4xf32, #tpu.memory_space<vmem>>, %arg10: memref<8x8xf32, #tpu.memory_space<vmem>>, %arg11: memref<8x8xf32, #tpu.memory_space<vmem>>, %arg12: memref<8x1xf32, #tpu.memory_space<vmem>>, %arg13: memref<1x8x256xf32, #tpu.memory_space<vmem>>, %arg14: memref<8x580xf32, #tpu.memory_space<vmem>>, %arg15: memref<72x324xf32, #tpu.memory_space<vmem>>) attributes {dimension_semantics = [#tpu.dimension_semantics<parallel>], iteration_bounds = array<i64: 2>, scalar_prefetch = 0 : i64, scratch_operands = 2 : i64, tpu.core_type = #tpu.core_type<tc>, window_params = [{transform_indices = @transform_0, window_bounds = array<i64: 1, 8, 256>}, {pipeline_mode = #tpu.pipeline_mode<synchronous>, transform_indices = @transform_1, window_bounds = array<i64: 1, 324>}, {pipeline_mode = #tpu.pipeline_mode<synchronous>, transform_indices = @transform_2, window_bounds = array<i64: 8, 72>}, {pipeline_mode = #tpu.pipeline_mode<synchronous>, transform_indices = @transform_3, window_bounds = array<i64: 8, 1>}, {pipeline_mode = #tpu.pipeline_mode<synchronous>, transform_indices = @transform_4, window_bounds = array<i64: 8, 1>}, {pipeline_mode = #tpu.pipeline_mode<synchronous>, transform_indices = @transform_5, window_bounds = array<i64: 8, 72>}, {pipeline_mode = #tpu.pipeline_mode<synchronous>, transform_indices = @transform_6, window_bounds = array<i64: 8, 1>}, {pipeline_mode = #tpu.pipeline_mode<synchronous>, transform_indices = @transform_7, window_bounds = array<i64: 4, 8>}, {pipeline_mode = #tpu.pipeline_mode<synchronous>, transform_indices = @transform_8, window_bounds = array<i64: 8, 4>}, {pipeline_mode = #tpu.pipeline_mode<synchronous>, transform_indices = @transform_9, window_bounds = array<i64: 8, 8>}, {pipeline_mode = #tpu.pipeline_mode<synchronous>, transform_indices = @transform_10, window_bounds = array<i64: 8, 8>}, {pipeline_mode = #tpu.pipeline_mode<synchronous>, transform_indices = @transform_11, window_bounds = array<i64: 8, 1>}, {transform_indices = @transform_12, window_bounds = array<i64: 1, 8, 256>}]} {
    %c0 = arith.constant 0 : index
    %c0_0 = arith.constant 0 : index
    %c0_1 = arith.constant 0 : index
    %0 = vector.load %arg1[%c0, %c0_0, %c0_1] : memref<1x8x256xf32, #tpu.memory_space<vmem>>, vector<1x8x256xf32>
    %1 = vector.shape_cast %0 : vector<1x8x256xf32> to vector<8x256xf32>
    %c0_2 = arith.constant 0 : index
    %c0_3 = arith.constant 0 : index
    %2 = vector.load %arg2[%c0_2, %c0_3] : memref<1x324xf32, #tpu.memory_space<vmem>>, vector<1x324xf32>
    %cst = arith.constant 0.000000e+00 : f32
    %3 = vector.broadcast %cst : f32 to vector<8x580xf32>
    %c0_4 = arith.constant 0 : index
    %c0_5 = arith.constant 0 : index
    %4 = vector.load %arg14[%c0_4, %c0_5] : memref<8x580xf32, #tpu.memory_space<vmem>>, vector<8x580xf32>
    tpu.vector_store %arg14[%c0_4, %c0_5], %3 {strides = array<i32>} : memref<8x580xf32, #tpu.memory_space<vmem>>, vector<8x580xf32>,
    %5 = vector.extract_strided_slice %1 {offsets = [0, 0], sizes = [8, 16], strides = [1, 1]} : vector<8x256xf32> to vector<8x16xf32>
    %c0_6 = arith.constant 0 : index
    %c147 = arith.constant 147 : index
    %6 = vector.load %arg14[%c0_6, %c147] : memref<8x580xf32, #tpu.memory_space<vmem>>, vector<8x16xf32>
    tpu.vector_store %arg14[%c0_6, %c147], %5 {strides = array<i32>} : memref<8x580xf32, #tpu.memory_space<vmem>>, vector<8x16xf32>,
    %7 = vector.extract_strided_slice %1 {offsets = [0, 16], sizes = [8, 16], strides = [1, 1]} : vector<8x256xf32> to vector<8x16xf32>
    %c0_7 = arith.constant 0 : index
    %c165 = arith.constant 165 : index
    %8 = vector.load %arg14[%c0_7, %c165] : memref<8x580xf32, #tpu.memory_space<vmem>>, vector<8x16xf32>
    tpu.vector_store %arg14[%c0_7, %c165], %7 {strides = array<i32>} : memref<8x580xf32, #tpu.memory_space<vmem>>, vector<8x16xf32>,
    %9 = vector.extract_strided_slice %1 {offsets = [0, 32], sizes = [8, 16], strides = [1, 1]} : vector<8x256xf32> to vector<8x16xf32>
    %c0_8 = arith.constant 0 : index
    %c183 = arith.constant 183 : index
    %10 = vector.load %arg14[%c0_8, %c183] : memref<8x580xf32, #tpu.memory_space<vmem>>, vector<8x16xf32>
    tpu.vector_store %arg14[%c0_8, %c183], %9 {strides = array<i32>} : memref<8x580xf32, #tpu.memory_space<vmem>>, vector<8x16xf32>,
    %11 = vector.extract_strided_slice %1 {offsets = [0, 48], sizes = [8, 16], strides = [1, 1]} : vector<8x256xf32> to vector<8x16xf32>
    %c0_9 = arith.constant 0 : index
    %c201 = arith.constant 201 : index
    %12 = vector.load %arg14[%c0_9, %c201] : memref<8x580xf32, #tpu.memory_space<vmem>>, vector<8x16xf32>
    tpu.vector_store %arg14[%c0_9, %c201], %11 {strides = array<i32>} : memref<8x580xf32, #tpu.memory_space<vmem>>, vector<8x16xf32>,
    %13 = vector.extract_strided_slice %1 {offsets = [0, 64], sizes = [8, 16], strides = [1, 1]} : vector<8x256xf32> to vector<8x16xf32>
    %c0_10 = arith.constant 0 : index
    %c219 = arith.constant 219 : index
    %14 = vector.load %arg14[%c0_10, %c219] : memref<8x580xf32, #tpu.memory_space<vmem>>, vector<8x16xf32>
    tpu.vector_store %arg14[%c0_10, %c219], %13 {strides = array<i32>} : memref<8x580xf32, #tpu.memory_space<vmem>>, vector<8x16xf32>,
    %15 = vector.extract_strided_slice %1 {offsets = [0, 80], sizes = [8, 16], strides = [1, 1]} : vector<8x256xf32> to vector<8x16xf32>
    %c0_11 = arith.constant 0 : index
    %c237 = arith.constant 237 : index
    %16 = vector.load %arg14[%c0_11, %c237] : memref<8x580xf32, #tpu.memory_space<vmem>>, vector<8x16xf32>
    tpu.vector_store %arg14[%c0_11, %c237], %15 {strides = array<i32>} : memref<8x580xf32, #tpu.memory_space<vmem>>, vector<8x16xf32>,
    %17 = vector.extract_strided_slice %1 {offsets = [0, 96], sizes = [8, 16], strides = [1, 1]} : vector<8x256xf32> to vector<8x16xf32>
    %c0_12 = arith.constant 0 : index
    %c255 = arith.constant 255 : index
    %18 = vector.load %arg14[%c0_12, %c255] : memref<8x580xf32, #tpu.memory_space<vmem>>, vector<8x16xf32>
    tpu.vector_store %arg14[%c0_12, %c255], %17 {strides = array<i32>} : memref<8x580xf32, #tpu.memory_space<vmem>>, vector<8x16xf32>,
    %19 = vector.extract_strided_slice %1 {offsets = [0, 112], sizes = [8, 16], strides = [1, 1]} : vector<8x256xf32> to vector<8x16xf32>
    %c0_13 = arith.constant 0 : index
    %c273 = arith.constant 273 : index
    %20 = vector.load %arg14[%c0_13, %c273] : memref<8x580xf32, #tpu.memory_space<vmem>>, vector<8x16xf32>
    tpu.vector_store %arg14[%c0_13, %c273], %19 {strides = array<i32>} : memref<8x580xf32, #tpu.memory_space<vmem>>, vector<8x16xf32>,
    %21 = vector.extract_strided_slice %1 {offsets = [0, 128], sizes = [8, 16], strides = [1, 1]} : vector<8x256xf32> to vector<8x16xf32>
    %c0_14 = arith.constant 0 : index
    %c291 = arith.constant 291 : index
    %22 = vector.load %arg14[%c0_14, %c291] : memref<8x580xf32, #tpu.memory_space<vmem>>, vector<8x16xf32>
    tpu.vector_store %arg14[%c0_14, %c291], %21 {strides = array<i32>} : memref<8x580xf32, #tpu.memory_space<vmem>>, vector<8x16xf32>,
    %23 = vector.extract_strided_slice %1 {offsets = [0, 144], sizes = [8, 16], strides = [1, 1]} : vector<8x256xf32> to vector<8x16xf32>
    %c0_15 = arith.constant 0 : index
    %c309 = arith.constant 309 : index
    %24 = vector.load %arg14[%c0_15, %c309] : memref<8x580xf32, #tpu.memory_space<vmem>>, vector<8x16xf32>
    tpu.vector_store %arg14[%c0_15, %c309], %23 {strides = array<i32>} : memref<8x580xf32, #tpu.memory_space<vmem>>, vector<8x16xf32>,
    %25 = vector.extract_strided_slice %1 {offsets = [0, 160], sizes = [8, 16], strides = [1, 1]} : vector<8x256xf32> to vector<8x16xf32>
    %c0_16 = arith.constant 0 : index
    %c327 = arith.constant 327 : index
    %26 = vector.load %arg14[%c0_16, %c327] : memref<8x580xf32, #tpu.memory_space<vmem>>, vector<8x16xf32>
    tpu.vector_store %arg14[%c0_16, %c327], %25 {strides = array<i32>} : memref<8x580xf32, #tpu.memory_space<vmem>>, vector<8x16xf32>,
    %27 = vector.extract_strided_slice %1 {offsets = [0, 176], sizes = [8, 16], strides = [1, 1]} : vector<8x256xf32> to vector<8x16xf32>
    %c0_17 = arith.constant 0 : index
    %c345 = arith.constant 345 : index
    %28 = vector.load %arg14[%c0_17, %c345] : memref<8x580xf32, #tpu.memory_space<vmem>>, vector<8x16xf32>
    tpu.vector_store %arg14[%c0_17, %c345], %27 {strides = array<i32>} : memref<8x580xf32, #tpu.memory_space<vmem>>, vector<8x16xf32>,
    %29 = vector.extract_strided_slice %1 {offsets = [0, 192], sizes = [8, 16], strides = [1, 1]} : vector<8x256xf32> to vector<8x16xf32>
    %c0_18 = arith.constant 0 : index
    %c363 = arith.constant 363 : index
    %30 = vector.load %arg14[%c0_18, %c363] : memref<8x580xf32, #tpu.memory_space<vmem>>, vector<8x16xf32>
    tpu.vector_store %arg14[%c0_18, %c363], %29 {strides = array<i32>} : memref<8x580xf32, #tpu.memory_space<vmem>>, vector<8x16xf32>,
    %31 = vector.extract_strided_slice %1 {offsets = [0, 208], sizes = [8, 16], strides = [1, 1]} : vector<8x256xf32> to vector<8x16xf32>
    %c0_19 = arith.constant 0 : index
    %c381 = arith.constant 381 : index
    %32 = vector.load %arg14[%c0_19, %c381] : memref<8x580xf32, #tpu.memory_space<vmem>>, vector<8x16xf32>
    tpu.vector_store %arg14[%c0_19, %c381], %31 {strides = array<i32>} : memref<8x580xf32, #tpu.memory_space<vmem>>, vector<8x16xf32>,
    %33 = vector.extract_strided_slice %1 {offsets = [0, 224], sizes = [8, 16], strides = [1, 1]} : vector<8x256xf32> to vector<8x16xf32>
    %c0_20 = arith.constant 0 : index
    %c399 = arith.constant 399 : index
    %34 = vector.load %arg14[%c0_20, %c399] : memref<8x580xf32, #tpu.memory_space<vmem>>, vector<8x16xf32>
    tpu.vector_store %arg14[%c0_20, %c399], %33 {strides = array<i32>} : memref<8x580xf32, #tpu.memory_space<vmem>>, vector<8x16xf32>,
    %35 = vector.extract_strided_slice %1 {offsets = [0, 240], sizes = [8, 16], strides = [1, 1]} : vector<8x256xf32> to vector<8x16xf32>
    %c0_21 = arith.constant 0 : index
    %c417 = arith.constant 417 : index
    %36 = vector.load %arg14[%c0_21, %c417] : memref<8x580xf32, #tpu.memory_space<vmem>>, vector<8x16xf32>
    tpu.vector_store %arg14[%c0_21, %c417], %35 {strides = array<i32>} : memref<8x580xf32, #tpu.memory_space<vmem>>, vector<8x16xf32>,
    %c0_22 = arith.constant 0 : index
    %c109 = arith.constant 109 : index
    %37 = vector.load %arg14[%c0_22, %c109] : memref<8x580xf32, #tpu.memory_space<vmem>>, vector<8x324xf32>
    %c0_23 = arith.constant 0 : index
    %c0_24 = arith.constant 0 : index
    %38 = vector.load %arg15[%c0_23, %c0_24] : memref<72x324xf32, #tpu.memory_space<vmem>>, vector<8x324xf32>
    tpu.vector_store %arg15[%c0_23, %c0_24], %37 {strides = array<i32>} : memref<72x324xf32, #tpu.memory_space<vmem>>, vector<8x324xf32>,
    %c0_25 = arith.constant 0 : index
    %c110 = arith.constant 110 : index
    %39 = vector.load %arg14[%c0_25, %c110] : memref<8x580xf32, #tpu.memory_space<vmem>>, vector<8x324xf32>
    %c8 = arith.constant 8 : index
    %c0_26 = arith.constant 0 : index
    %40 = vector.load %arg15[%c8, %c0_26] : memref<72x324xf32, #tpu.memory_space<vmem>>, vector<8x324xf32>
    tpu.vector_store %arg15[%c8, %c0_26], %39 {strides = array<i32>} : memref<72x324xf32, #tpu.memory_space<vmem>>, vector<8x324xf32>,
    %c0_27 = arith.constant 0 : index
    %c111 = arith.constant 111 : index
    %41 = vector.load %arg14[%c0_27, %c111] : memref<8x580xf32, #tpu.memory_space<vmem>>, vector<8x324xf32>
    %c16 = arith.constant 16 : index
    %c0_28 = arith.constant 0 : index
    %42 = vector.load %arg15[%c16, %c0_28] : memref<72x324xf32, #tpu.memory_space<vmem>>, vector<8x324xf32>
    tpu.vector_store %arg15[%c16, %c0_28], %41 {strides = array<i32>} : memref<72x324xf32, #tpu.memory_space<vmem>>, vector<8x324xf32>,
    %c0_29 = arith.constant 0 : index
    %c127 = arith.constant 127 : index
    %43 = vector.load %arg14[%c0_29, %c127] : memref<8x580xf32, #tpu.memory_space<vmem>>, vector<8x324xf32>
    %c24 = arith.constant 24 : index
    %c0_30 = arith.constant 0 : index
    %44 = vector.load %arg15[%c24, %c0_30] : memref<72x324xf32, #tpu.memory_space<vmem>>, vector<8x324xf32>
    tpu.vector_store %arg15[%c24, %c0_30], %43 {strides = array<i32>} : memref<72x324xf32, #tpu.memory_space<vmem>>, vector<8x324xf32>,
    %c0_31 = arith.constant 0 : index
    %c128 = arith.constant 128 : index
    %45 = vector.load %arg14[%c0_31, %c128] : memref<8x580xf32, #tpu.memory_space<vmem>>, vector<8x324xf32>
    %c32 = arith.constant 32 : index
    %c0_32 = arith.constant 0 : index
    %46 = vector.load %arg15[%c32, %c0_32] : memref<72x324xf32, #tpu.memory_space<vmem>>, vector<8x324xf32>
    tpu.vector_store %arg15[%c32, %c0_32], %45 {strides = array<i32>} : memref<72x324xf32, #tpu.memory_space<vmem>>, vector<8x324xf32>,
    %c0_33 = arith.constant 0 : index
    %c129 = arith.constant 129 : index
    %47 = vector.load %arg14[%c0_33, %c129] : memref<8x580xf32, #tpu.memory_space<vmem>>, vector<8x324xf32>
    %c40 = arith.constant 40 : index
    %c0_34 = arith.constant 0 : index
    %48 = vector.load %arg15[%c40, %c0_34] : memref<72x324xf32, #tpu.memory_space<vmem>>, vector<8x324xf32>
    tpu.vector_store %arg15[%c40, %c0_34], %47 {strides = array<i32>} : memref<72x324xf32, #tpu.memory_space<vmem>>, vector<8x324xf32>,
    %c0_35 = arith.constant 0 : index
    %c145 = arith.constant 145 : index
    %49 = vector.load %arg14[%c0_35, %c145] : memref<8x580xf32, #tpu.memory_space<vmem>>, vector<8x324xf32>
    %c48 = arith.constant 48 : index
    %c0_36 = arith.constant 0 : index
    %50 = vector.load %arg15[%c48, %c0_36] : memref<72x324xf32, #tpu.memory_space<vmem>>, vector<8x324xf32>
    tpu.vector_store %arg15[%c48, %c0_36], %49 {strides = array<i32>} : memref<72x324xf32, #tpu.memory_space<vmem>>, vector<8x324xf32>,
    %c0_37 = arith.constant 0 : index
    %c146 = arith.constant 146 : index
    %51 = vector.load %arg14[%c0_37, %c146] : memref<8x580xf32, #tpu.memory_space<vmem>>, vector<8x324xf32>
    %c56 = arith.constant 56 : index
    %c0_38 = arith.constant 0 : index
    %52 = vector.load %arg15[%c56, %c0_38] : memref<72x324xf32, #tpu.memory_space<vmem>>, vector<8x324xf32>
    tpu.vector_store %arg15[%c56, %c0_38], %51 {strides = array<i32>} : memref<72x324xf32, #tpu.memory_space<vmem>>, vector<8x324xf32>,
    %c0_39 = arith.constant 0 : index
    %c147_40 = arith.constant 147 : index
    %53 = vector.load %arg14[%c0_39, %c147_40] : memref<8x580xf32, #tpu.memory_space<vmem>>, vector<8x324xf32>
    %c64 = arith.constant 64 : index
    %c0_41 = arith.constant 0 : index
    %54 = vector.load %arg15[%c64, %c0_41] : memref<72x324xf32, #tpu.memory_space<vmem>>, vector<8x324xf32>
    tpu.vector_store %arg15[%c64, %c0_41], %53 {strides = array<i32>} : memref<72x324xf32, #tpu.memory_space<vmem>>, vector<8x324xf32>,
    %c0_42 = arith.constant 0 : index
    %c0_43 = arith.constant 0 : index
    %55 = vector.load %arg3[%c0_42, %c0_43] : memref<8x72xf32, #tpu.memory_space<vmem>>, vector<8x72xf32>
    %c0_44 = arith.constant 0 : index
    %c0_45 = arith.constant 0 : index
    %56 = vector.load %arg15[%c0_44, %c0_45] : memref<72x324xf32, #tpu.memory_space<vmem>>, vector<72x324xf32>
    %cst_46 = arith.constant dense<0.000000e+00> : vector<8x324xf32>
    %57 = tpu.matmul %55, %56, %cst_46 {dimension_numbers = #tpu.dot_dimension_numbers<[1], [0], [0], [1], [0, 0, 1, 1], [], []>} : vector<8x72xf32>, vector<72x324xf32>, vector<8x324xf32> -> vector<8x324xf32>
    %c0_47 = arith.constant 0 : index
    %c0_48 = arith.constant 0 : index
    %58 = vector.load %arg4[%c0_47, %c0_48] : memref<8x1xf32, #tpu.memory_space<vmem>>, vector<8x1xf32>
    %59 = vector.broadcast %58 : vector<8x1xf32> to vector<8x324xf32>
    %60 = arith.addf %57, %59 : vector<8x324xf32>
    %cst_49 = arith.constant 0.000000e+00 : f32
    %61 = vector.broadcast %cst_49 : f32 to vector<8x324xf32>
    %62 = arith.cmpf oge, %60, %61 : vector<8x324xf32>
    %c0_50 = arith.constant 0 : index
    %c0_51 = arith.constant 0 : index
    %63 = vector.load %arg5[%c0_50, %c0_51] : memref<8x1xf32, #tpu.memory_space<vmem>>, vector<8x1xf32>
    %64 = vector.broadcast %63 : vector<8x1xf32> to vector<8x324xf32>
    %65 = arith.mulf %64, %60 : vector<8x324xf32>
    %66 = arith.select %62, %60, %65 : vector<8x324xi1>, vector<8x324xf32>
    %67 = vector.broadcast %2 : vector<1x324xf32> to vector<8x324xf32>
    %68 = arith.mulf %66, %67 : vector<8x324xf32>
    %c0_52 = arith.constant 0 : index
    %c128_53 = arith.constant 128 : index
    %69 = vector.load %arg14[%c0_52, %c128_53] : memref<8x580xf32, #tpu.memory_space<vmem>>, vector<8x324xf32>
    tpu.vector_store %arg14[%c0_52, %c128_53], %68 {strides = array<i32>} : memref<8x580xf32, #tpu.memory_space<vmem>>, vector<8x324xf32>,
    %c0_54 = arith.constant 0 : index
    %c109_55 = arith.constant 109 : index
    %70 = vector.load %arg14[%c0_54, %c109_55] : memref<8x580xf32, #tpu.memory_space<vmem>>, vector<8x324xf32>
    %c0_56 = arith.constant 0 : index
    %c0_57 = arith.constant 0 : index
    %71 = vector.load %arg15[%c0_56, %c0_57] : memref<72x324xf32, #tpu.memory_space<vmem>>, vector<8x324xf32>
    tpu.vector_store %arg15[%c0_56, %c0_57], %70 {strides = array<i32>} : memref<72x324xf32, #tpu.memory_space<vmem>>, vector<8x324xf32>,
    %c0_58 = arith.constant 0 : index
    %c110_59 = arith.constant 110 : index
    %72 = vector.load %arg14[%c0_58, %c110_59] : memref<8x580xf32, #tpu.memory_space<vmem>>, vector<8x324xf32>
    %c8_60 = arith.constant 8 : index
    %c0_61 = arith.constant 0 : index
    %73 = vector.load %arg15[%c8_60, %c0_61] : memref<72x324xf32, #tpu.memory_space<vmem>>, vector<8x324xf32>
    tpu.vector_store %arg15[%c8_60, %c0_61], %72 {strides = array<i32>} : memref<72x324xf32, #tpu.memory_space<vmem>>, vector<8x324xf32>,
    %c0_62 = arith.constant 0 : index
    %c111_63 = arith.constant 111 : index
    %74 = vector.load %arg14[%c0_62, %c111_63] : memref<8x580xf32, #tpu.memory_space<vmem>>, vector<8x324xf32>
    %c16_64 = arith.constant 16 : index
    %c0_65 = arith.constant 0 : index
    %75 = vector.load %arg15[%c16_64, %c0_65] : memref<72x324xf32, #tpu.memory_space<vmem>>, vector<8x324xf32>
    tpu.vector_store %arg15[%c16_64, %c0_65], %74 {strides = array<i32>} : memref<72x324xf32, #tpu.memory_space<vmem>>, vector<8x324xf32>,
    %c0_66 = arith.constant 0 : index
    %c127_67 = arith.constant 127 : index
    %76 = vector.load %arg14[%c0_66, %c127_67] : memref<8x580xf32, #tpu.memory_space<vmem>>, vector<8x324xf32>
    %c24_68 = arith.constant 24 : index
    %c0_69 = arith.constant 0 : index
    %77 = vector.load %arg15[%c24_68, %c0_69] : memref<72x324xf32, #tpu.memory_space<vmem>>, vector<8x324xf32>
    tpu.vector_store %arg15[%c24_68, %c0_69], %76 {strides = array<i32>} : memref<72x324xf32, #tpu.memory_space<vmem>>, vector<8x324xf32>,
    %c0_70 = arith.constant 0 : index
    %c128_71 = arith.constant 128 : index
    %78 = vector.load %arg14[%c0_70, %c128_71] : memref<8x580xf32, #tpu.memory_space<vmem>>, vector<8x324xf32>
    %c32_72 = arith.constant 32 : index
    %c0_73 = arith.constant 0 : index
    %79 = vector.load %arg15[%c32_72, %c0_73] : memref<72x324xf32, #tpu.memory_space<vmem>>, vector<8x324xf32>
    tpu.vector_store %arg15[%c32_72, %c0_73], %78 {strides = array<i32>} : memref<72x324xf32, #tpu.memory_space<vmem>>, vector<8x324xf32>,
    %c0_74 = arith.constant 0 : index
    %c129_75 = arith.constant 129 : index
    %80 = vector.load %arg14[%c0_74, %c129_75] : memref<8x580xf32, #tpu.memory_space<vmem>>, vector<8x324xf32>
    %c40_76 = arith.constant 40 : index
    %c0_77 = arith.constant 0 : index
    %81 = vector.load %arg15[%c40_76, %c0_77] : memref<72x324xf32, #tpu.memory_space<vmem>>, vector<8x324xf32>
    tpu.vector_store %arg15[%c40_76, %c0_77], %80 {strides = array<i32>} : memref<72x324xf32, #tpu.memory_space<vmem>>, vector<8x324xf32>,
    %c0_78 = arith.constant 0 : index
    %c145_79 = arith.constant 145 : index
    %82 = vector.load %arg14[%c0_78, %c145_79] : memref<8x580xf32, #tpu.memory_space<vmem>>, vector<8x324xf32>
    %c48_80 = arith.constant 48 : index
    %c0_81 = arith.constant 0 : index
    %83 = vector.load %arg15[%c48_80, %c0_81] : memref<72x324xf32, #tpu.memory_space<vmem>>, vector<8x324xf32>
    tpu.vector_store %arg15[%c48_80, %c0_81], %82 {strides = array<i32>} : memref<72x324xf32, #tpu.memory_space<vmem>>, vector<8x324xf32>,
    %c0_82 = arith.constant 0 : index
    %c146_83 = arith.constant 146 : index
    %84 = vector.load %arg14[%c0_82, %c146_83] : memref<8x580xf32, #tpu.memory_space<vmem>>, vector<8x324xf32>
    %c56_84 = arith.constant 56 : index
    %c0_85 = arith.constant 0 : index
    %85 = vector.load %arg15[%c56_84, %c0_85] : memref<72x324xf32, #tpu.memory_space<vmem>>, vector<8x324xf32>
    tpu.vector_store %arg15[%c56_84, %c0_85], %84 {strides = array<i32>} : memref<72x324xf32, #tpu.memory_space<vmem>>, vector<8x324xf32>,
    %c0_86 = arith.constant 0 : index
    %c147_87 = arith.constant 147 : index
    %86 = vector.load %arg14[%c0_86, %c147_87] : memref<8x580xf32, #tpu.memory_space<vmem>>, vector<8x324xf32>
    %c64_88 = arith.constant 64 : index
    %c0_89 = arith.constant 0 : index
    %87 = vector.load %arg15[%c64_88, %c0_89] : memref<72x324xf32, #tpu.memory_space<vmem>>, vector<8x324xf32>
    tpu.vector_store %arg15[%c64_88, %c0_89], %86 {strides = array<i32>} : memref<72x324xf32, #tpu.memory_space<vmem>>, vector<8x324xf32>,
    %c0_90 = arith.constant 0 : index
    %c0_91 = arith.constant 0 : index
    %88 = vector.load %arg6[%c0_90, %c0_91] : memref<8x72xf32, #tpu.memory_space<vmem>>, vector<8x72xf32>
    %c0_92 = arith.constant 0 : index
    %c0_93 = arith.constant 0 : index
    %89 = vector.load %arg15[%c0_92, %c0_93] : memref<72x324xf32, #tpu.memory_space<vmem>>, vector<72x324xf32>
    %cst_94 = arith.constant dense<0.000000e+00> : vector<8x324xf32>
    %90 = tpu.matmul %88, %89, %cst_94 {dimension_numbers = #tpu.dot_dimension_numbers<[1], [0], [0], [1], [0, 0, 1, 1], [], []>} : vector<8x72xf32>, vector<72x324xf32>, vector<8x324xf32> -> vector<8x324xf32>
    %c0_95 = arith.constant 0 : index
    %c0_96 = arith.constant 0 : index
    %91 = vector.load %arg7[%c0_95, %c0_96] : memref<8x1xf32, #tpu.memory_space<vmem>>, vector<8x1xf32>
    %92 = vector.broadcast %91 : vector<8x1xf32> to vector<8x324xf32>
    %93 = arith.addf %90, %92 : vector<8x324xf32>
    %94 = vector.broadcast %2 : vector<1x324xf32> to vector<8x324xf32>
    %95 = arith.mulf %93, %94 : vector<8x324xf32>
    %cst_97 = arith.constant dense<0.000000e+00> : vector<8xf32>
    %96 = vector.multi_reduction <add>, %95, %cst_97 [1] : vector<8x324xf32> to vector<8xf32>
    %97 = vector.shape_cast %96 : vector<8xf32> to vector<8x1xf32>
    %cst_98 = arith.constant 3.906250e-03 : f32
    %98 = vector.broadcast %cst_98 : f32 to vector<8x1xf32>
    %99 = arith.mulf %97, %98 : vector<8x1xf32>
    %cst_99 = arith.constant 5.000000e-01 : f32
    %100 = vector.broadcast %cst_99 : f32 to vector<1x324xf32>
    %101 = arith.cmpf ogt, %2, %100 : vector<1x324xf32>
    %cst_100 = arith.constant 0xFF800000 : f32
    %102 = vector.shape_cast %101 : vector<1x324xi1> to vector<1x324xi1>
    %103 = vector.broadcast %102 : vector<1x324xi1> to vector<8x324xi1>
    %104 = vector.broadcast %cst_100 : f32 to vector<8x324xf32>
    %105 = arith.select %103, %93, %104 : vector<8x324xi1>, vector<8x324xf32>
    %cst_101 = arith.constant dense<0xFF800000> : vector<8xf32>
    %106 = vector.multi_reduction <maximumf>, %105, %cst_101 [1] : vector<8x324xf32> to vector<8xf32>
    %107 = vector.shape_cast %106 : vector<8xf32> to vector<8x1xf32>
    %108 = tpu.concatenate %99, %107 in 1 : vector<8x1xf32>, vector<8x1xf32> -> vector<8x2xf32>
    %c0_102 = arith.constant 0 : index
    %c0_103 = arith.constant 0 : index
    %109 = vector.load %arg8[%c0_102, %c0_103] : memref<4x8xf32, #tpu.memory_space<vmem>>, vector<4x8xf32>
    %cst_104 = arith.constant dense<0.000000e+00> : vector<4x2xf32>
    %110 = tpu.matmul %109, %108, %cst_104 {dimension_numbers = #tpu.dot_dimension_numbers<[1], [0], [0], [1], [0, 0, 1, 1], [], []>} : vector<4x8xf32>, vector<8x2xf32>, vector<4x2xf32> -> vector<4x2xf32>
    %cst_105 = arith.constant 0.000000e+00 : f32
    %111 = vector.broadcast %cst_105 : f32 to vector<4x2xf32>
    %112 = arith.maximumf %110, %111 : vector<4x2xf32>
    %c0_106 = arith.constant 0 : index
    %c0_107 = arith.constant 0 : index
    %113 = vector.load %arg9[%c0_106, %c0_107] : memref<8x4xf32, #tpu.memory_space<vmem>>, vector<8x4xf32>
    %cst_108 = arith.constant dense<0.000000e+00> : vector<8x2xf32>
    %114 = tpu.matmul %113, %112, %cst_108 {dimension_numbers = #tpu.dot_dimension_numbers<[1], [0], [0], [1], [0, 0, 1, 1], [], []>} : vector<8x4xf32>, vector<4x2xf32>, vector<8x2xf32> -> vector<8x2xf32>
    %cst_109 = arith.constant 0.000000e+00 : f32
    %115 = vector.broadcast %cst_109 : f32 to vector<8x2xf32>
    %116 = arith.subf %115, %114 : vector<8x2xf32>
    %117 = math.exp %116 : vector<8x2xf32>
    %cst_110 = arith.constant 1.000000e+00 : f32
    %118 = vector.broadcast %cst_110 : f32 to vector<8x2xf32>
    %119 = arith.addf %118, %117 : vector<8x2xf32>
    %cst_111 = arith.constant 1.000000e+00 : f32
    %120 = vector.broadcast %cst_111 : f32 to vector<8x2xf32>
    %121 = arith.divf %120, %119 : vector<8x2xf32>
    %122 = tpu.iota {dimensions = array<i32: 0>} : vector<8x8xi32>
    %123 = tpu.iota {dimensions = array<i32: 1>} : vector<8x8xi32>
    %124 = arith.cmpi eq, %122, %123 : vector<8x8xi32>
    %125 = arith.extui %124 : vector<8x8xi1> to vector<8x8xi32>
    %126 = arith.sitofp %125 : vector<8x8xi32> to vector<8x8xf32>
    %127 = vector.extract_strided_slice %121 {offsets = [0, 0], sizes = [8, 1], strides = [1, 1]} : vector<8x2xf32> to vector<8x1xf32>
    %128 = vector.broadcast %127 : vector<8x1xf32> to vector<8x8xf32>
    %129 = arith.mulf %126, %128 : vector<8x8xf32>
    %cst_112 = arith.constant dense<0.000000e+00> : vector<8xf32>
    %130 = vector.multi_reduction <add>, %129, %cst_112 [0] : vector<8x8xf32> to vector<8xf32>
    %131 = vector.shape_cast %130 : vector<8xf32> to vector<1x8xf32>
    %132 = vector.extract_strided_slice %121 {offsets = [0, 1], sizes = [8, 1], strides = [1, 1]} : vector<8x2xf32> to vector<8x1xf32>
    %133 = vector.broadcast %132 : vector<8x1xf32> to vector<8x8xf32>
    %134 = arith.mulf %126, %133 : vector<8x8xf32>
    %cst_113 = arith.constant dense<0.000000e+00> : vector<8xf32>
    %135 = vector.multi_reduction <add>, %134, %cst_113 [0] : vector<8x8xf32> to vector<8xf32>
    %136 = vector.shape_cast %135 : vector<8xf32> to vector<1x8xf32>
    %c0_114 = arith.constant 0 : index
    %c0_115 = arith.constant 0 : index
    %137 = vector.load %arg10[%c0_114, %c0_115] : memref<8x8xf32, #tpu.memory_space<vmem>>, vector<8x8xf32>
    %138 = vector.broadcast %131 : vector<1x8xf32> to vector<8x8xf32>
    %139 = arith.mulf %137, %138 : vector<8x8xf32>
    %c0_116 = arith.constant 0 : index
    %c0_117 = arith.constant 0 : index
    %140 = vector.load %arg11[%c0_116, %c0_117] : memref<8x8xf32, #tpu.memory_space<vmem>>, vector<8x8xf32>
    %141 = vector.broadcast %136 : vector<1x8xf32> to vector<8x8xf32>
    %142 = arith.mulf %140, %141 : vector<8x8xf32>
    %143 = arith.addf %139, %142 : vector<8x8xf32>
    %cst_118 = arith.constant dense<0.000000e+00> : vector<8x256xf32>
    %144 = tpu.matmul %143, %1, %cst_118 {dimension_numbers = #tpu.dot_dimension_numbers<[1], [0], [0], [1], [0, 0, 1, 1], [], []>} : vector<8x8xf32>, vector<8x256xf32>, vector<8x256xf32> -> vector<8x256xf32>
    %c0_119 = arith.constant 0 : index
    %c0_120 = arith.constant 0 : index
    %145 = vector.load %arg12[%c0_119, %c0_120] : memref<8x1xf32, #tpu.memory_space<vmem>>, vector<8x1xf32>
    %146 = vector.broadcast %145 : vector<8x1xf32> to vector<8x256xf32>
    %147 = arith.addf %144, %146 : vector<8x256xf32>
    %c0_121 = arith.constant 0 : index
    %c0_122 = arith.constant 0 : index
    %c0_123 = arith.constant 0 : index
    %148 = vector.load %arg13[%c0_121, %c0_122, %c0_123] : memref<1x8x256xf32, #tpu.memory_space<vmem>>, vector<1x8x256xf32>
    %149 = vector.shape_cast %148 : vector<1x8x256xf32> to vector<8x256xf32>
    %150 = vector.shape_cast %147 : vector<8x256xf32> to vector<1x8x256xf32>
    tpu.vector_store %arg13[%c0_121, %c0_122, %c0_123], %150 {strides = array<i32>} : memref<1x8x256xf32, #tpu.memory_space<vmem>>, vector<1x8x256xf32>,
    return
  }
  func.func @transform_0(%arg0: i32) -> (i32, i32, i32) {
    %c0_i32 = arith.constant 0 : i32
    %c0_i32_0 = arith.constant 0 : i32
    %c0_i32_1 = arith.constant 0 : i32
    return %arg0, %c0_i32, %c0_i32_0 : i32, i32, i32
  }
  func.func @transform_1(%arg0: i32) -> (i32, i32) {
    %c0_i32 = arith.constant 0 : i32
    %c0_i32_0 = arith.constant 0 : i32
    %c0_i32_1 = arith.constant 0 : i32
    return %c0_i32, %c0_i32_0 : i32, i32
  }
  func.func @transform_2(%arg0: i32) -> (i32, i32) {
    %c0_i32 = arith.constant 0 : i32
    %c0_i32_0 = arith.constant 0 : i32
    %c0_i32_1 = arith.constant 0 : i32
    return %c0_i32, %c0_i32_0 : i32, i32
  }
  func.func @transform_3(%arg0: i32) -> (i32, i32) {
    %c0_i32 = arith.constant 0 : i32
    %c0_i32_0 = arith.constant 0 : i32
    %c0_i32_1 = arith.constant 0 : i32
    return %c0_i32, %c0_i32_0 : i32, i32
  }
  func.func @transform_4(%arg0: i32) -> (i32, i32) {
    %c0_i32 = arith.constant 0 : i32
    %c0_i32_0 = arith.constant 0 : i32
    %c0_i32_1 = arith.constant 0 : i32
    return %c0_i32, %c0_i32_0 : i32, i32
  }
  func.func @transform_5(%arg0: i32) -> (i32, i32) {
    %c0_i32 = arith.constant 0 : i32
    %c0_i32_0 = arith.constant 0 : i32
    %c0_i32_1 = arith.constant 0 : i32
    return %c0_i32, %c0_i32_0 : i32, i32
  }
  func.func @transform_6(%arg0: i32) -> (i32, i32) {
    %c0_i32 = arith.constant 0 : i32
    %c0_i32_0 = arith.constant 0 : i32
    %c0_i32_1 = arith.constant 0 : i32
    return %c0_i32, %c0_i32_0 : i32, i32
  }
  func.func @transform_7(%arg0: i32) -> (i32, i32) {
    %c0_i32 = arith.constant 0 : i32
    %c0_i32_0 = arith.constant 0 : i32
    %c0_i32_1 = arith.constant 0 : i32
    return %c0_i32, %c0_i32_0 : i32, i32
  }
  func.func @transform_8(%arg0: i32) -> (i32, i32) {
    %c0_i32 = arith.constant 0 : i32
    %c0_i32_0 = arith.constant 0 : i32
    %c0_i32_1 = arith.constant 0 : i32
    return %c0_i32, %c0_i32_0 : i32, i32
  }
  func.func @transform_9(%arg0: i32) -> (i32, i32) {
    %c0_i32 = arith.constant 0 : i32
    %c0_i32_0 = arith.constant 0 : i32
    %c0_i32_1 = arith.constant 0 : i32
    return %c0_i32, %c0_i32_0 : i32, i32
  }
  func.func @transform_10(%arg0: i32) -> (i32, i32) {
    %c0_i32 = arith.constant 0 : i32
    %c0_i32_0 = arith.constant 0 : i32
    %c0_i32_1 = arith.constant 0 : i32
    return %c0_i32, %c0_i32_0 : i32, i32
  }
  func.func @transform_11(%arg0: i32) -> (i32, i32) {
    %c0_i32 = arith.constant 0 : i32
    %c0_i32_0 = arith.constant 0 : i32
    %c0_i32_1 = arith.constant 0 : i32
    return %c0_i32, %c0_i32_0 : i32, i32
  }
  func.func @transform_12(%arg0: i32) -> (i32, i32, i32) {
    %c0_i32 = arith.constant 0 : i32
    %c0_i32_0 = arith.constant 0 : i32
    %c0_i32_1 = arith.constant 0 : i32
    return %arg0, %c0_i32, %c0_i32_0 : i32, i32, i32
  }
}

</mosaic_0001>

<llo_original>
// kernel: tpu_custom_call.1
$region0: #{tpu_custom_call.1}
  #allocation0 [shape = 'u32[]', space=smem, size = 0x4, offset = 0x4, fixed_abs, tag = 'smem constant byte address 0x4 - core index']
  #allocation1 [shape = 'u32[72,128]{1,0:T(1,128)}', space=vmem, size = 0x9000, scoped, tag = 'internal scratch']
  #allocation2 [shape = 'f32[8,580]{1,0:T(8,128)}', space=vmem, size = 0x5000, scoped, tag = 'scratch operand']
  #allocation3 [shape = 'f32[72,324]{1,0:T(8,128)}', space=vmem, size = 0x1b000, scoped, tag = 'scratch operand']
  %s0 = inlined_call_operand.hbm [shape: f32[2,8,256], index: 0, kind: input, shape index: {}]
  %s1 = inlined_call_operand.vmem [shape: f32[1,324], index: 1, kind: input, shape index: {}]
  %s2 = inlined_call_operand.vmem [shape: f32[8,72], index: 2, kind: input, shape index: {}]
  %s3 = inlined_call_operand.vmem [shape: f32[8,1], index: 3, kind: input, shape index: {}]
  %s4 = inlined_call_operand.vmem [shape: f32[8,1], index: 4, kind: input, shape index: {}]
  %s5 = inlined_call_operand.vmem [shape: f32[8,72], index: 5, kind: input, shape index: {}]
  %s6 = inlined_call_operand.vmem [shape: f32[8,1], index: 6, kind: input, shape index: {}]
  %s7 = inlined_call_operand.vmem [shape: f32[4,8], index: 7, kind: input, shape index: {}]
  %s8 = inlined_call_operand.vmem [shape: f32[8,4], index: 8, kind: input, shape index: {}]
  %s9 = inlined_call_operand.vmem [shape: f32[8,8], index: 9, kind: input, shape index: {}]
  %s10 = inlined_call_operand.vmem [shape: f32[8,8], index: 10, kind: input, shape index: {}]
  %s11 = inlined_call_operand.vmem [shape: f32[8,1], index: 11, kind: input, shape index: {}]
  %s12 = inlined_call_operand.hbm [shape: f32[2,8,256], index: 12, kind: output, shape index: {}]
  %s13 = sld [smem:[#allocation0]]
  $region85: #{tpu_custom_call.1} parent=0
    _
  %s15 = ssub.s32 1, %s13
  %s16 = scalar_select 0, %s15, %s13
  $region1: #{tpu_custom_call.1} parent=0
    #allocation4 [shape = 'u8[16384]{0}', space=vmem, size = 0x4000, scoped, tag = 'input window, operand 0']
    #allocation5 [shape = 's32[2]{0}', space=sflag, size = 0x8, scoped, tag = 'scoped memory for tpu_custom_call.1']
    #allocation6 [shape = 's32[2]{0}', space=sflag, size = 0x8, scoped, tag = 'scoped memory for tpu_custom_call.1']
    #allocation7 [shape = 'u8[16384]{0}', space=vmem, size = 0x4000, scoped, tag = 'output window, operand 0']
    %17 = vsyncpa [#allocation5], 0
    %s18 = scalar_lea.sflag [#allocation5], 1
    %19 = vsyncpa %s18, 0
    %20 = vsyncpa [#allocation6], 0
    %s21 = scalar_lea.sflag [#allocation6], 1
    %22 = vsyncpa %s21, 0
    loop: start=0, step=1, limit=4
    $region2: #{tpu_custom_call.1} parent=1 // loop_pre_header
      _
    $region3: #{tpu_custom_call.1} parent=1 // loop_header
      %s24 = sphi 0, %s28
      %p25 = scmp.ge.s32.totalorder %s24, 4
      %s34 = sphi 0, %s36
      %s37 = sphi 0, %s34
      %s38 = sphi 0, %s37
      %s54 = sphi 0, %s38
      %s58 = sphi 0, %s58
      %s60 = sphi 0, %s58
      %s61 = sphi 0, %s60
      %s75 = sphi 0, %s61
      %s79 = sphi 0, %s79
      %s81 = sphi 0, %s79
      %s82 = sphi 0, %s81
      %s96 = sphi 0, %s82
      %s100 = sphi 0, %s100
      %s102 = sphi 0, %s100
      %s103 = sphi 0, %s102
      %s117 = sphi 0, %s103
      %s121 = sphi 0, %s121
      %s123 = sphi 0, %s121
      %s124 = sphi 0, %s123
      %s138 = sphi 0, %s124
      %s142 = sphi 0, %s142
      %s144 = sphi 0, %s142
      %s145 = sphi 0, %s144
      %s159 = sphi 0, %s145
      %s163 = sphi 0, %s163
      %s165 = sphi 0, %s163
      %s166 = sphi 0, %s165
      %s180 = sphi 0, %s166
      %s184 = sphi 0, %s184
      %s186 = sphi 0, %s184
      %s187 = sphi 0, %s186
      %s201 = sphi 0, %s187
      %s205 = sphi 0, %s205
      %s207 = sphi 0, %s205
      %s208 = sphi 0, %s207
      %s222 = sphi 0, %s208
      %s226 = sphi 0, %s226
      %s228 = sphi 0, %s226
      %s229 = sphi 0, %s228
      %s243 = sphi 0, %s229
      %s247 = sphi 0, %s247
      %s249 = sphi 0, %s247
      %s250 = sphi 0, %s249
      %s264 = sphi 0, %s250
      %s268 = sphi 0, %s268
      %s270 = sphi 0, %s268
      %s271 = sphi 0, %s270
      %s285 = sphi 0, %s271
      %s291 = sphi 0, %s293
      %s294 = sphi 0, %s291
      %s295 = sphi 0, %s294
      %s311 = sphi 0, %s295
    $region4: #{tpu_custom_call.1} parent=1 // loop_header_branch
      %27 = sbr.rel (%p25) target = $region8
    $region5: #{tpu_custom_call.1} parent=1 // loop_body
      %s29 = ssub.s32 %s24, 1
      %s30 = ssub.s32 %s24, 2
      %s31 = sadd.s32 %s24, 1
      %s32 = ssub.s32 %s24, %s31
      %p33 = scmp.eq.s32.totalorder %s32, 0
      %s35 = sadd.s32 %s34, 1
      %s36 = scalar_select %p33, %s34, %s35
      %p39 = pneg %p33
      %p40 = scmp.eq.s32.totalorder %s24, 1
      %p41 = por %p39, %p40
      %p42 = scmp.ne.s32.totalorder %s34, %s37
      %p43 = scmp.eq.s32.totalorder %s24, 0
      %p44 = por %p42, %p43
      %p45 = scmp.ne.s32.totalorder %s34, %s37
      %p46 = scmp.eq.s32.totalorder %s29, 1
      %p47 = por %p45, %p46
      %p48 = scmp.ne.s32.totalorder %s37, %s38
      %p49 = scmp.eq.s32.totalorder %s29, 0
      %p50 = por %p48, %p49
      %p51 = scmp.ne.s32.totalorder %s37, %s38
      %p52 = scmp.eq.s32.totalorder %s30, 1
      %p53 = por %p51, %p52
      %p55 = scmp.ne.s32.totalorder %s38, %s54
      %p56 = scmp.eq.s32.totalorder %s30, 0
      %p57 = por %p55, %p56
      %s59 = sadd.s32 %s58, 1
      %p62 = scmp.eq.s32.totalorder %s24, 1
      %p63 = scmp.ne.s32.totalorder %s58, %s60
      %p64 = scmp.eq.s32.totalorder %s24, 0
      %p65 = por %p63, %p64
      %p66 = scmp.ne.s32.totalorder %s58, %s60
      %p67 = scmp.eq.s32.totalorder %s29, 1
      %p68 = por %p66, %p67
      %p69 = scmp.ne.s32.totalorder %s60, %s61
      %p70 = scmp.eq.s32.totalorder %s29, 0
      %p71 = por %p69, %p70
      %p72 = scmp.ne.s32.totalorder %s60, %s61
      %p73 = scmp.eq.s32.totalorder %s30, 1
      %p74 = por %p72, %p73
      %p76 = scmp.ne.s32.totalorder %s61, %s75
      %p77 = scmp.eq.s32.totalorder %s30, 0
      %p78 = por %p76, %p77
      %s80 = sadd.s32 %s79, 1
      %p83 = scmp.eq.s32.totalorder %s24, 1
      %p84 = scmp.ne.s32.totalorder %s79, %s81
      %p85 = scmp.eq.s32.totalorder %s24, 0
      %p86 = por %p84, %p85
      %p87 = scmp.ne.s32.totalorder %s79, %s81
      %p88 = scmp.eq.s32.totalorder %s29, 1
      %p89 = por %p87, %p88
      %p90 = scmp.ne.s32.totalorder %s81, %s82
      %p91 = scmp.eq.s32.totalorder %s29, 0
      %p92 = por %p90, %p91
      %p93 = scmp.ne.s32.totalorder %s81, %s82
      %p94 = scmp.eq.s32.totalorder %s30, 1
      %p95 = por %p93, %p94
      %p97 = scmp.ne.s32.totalorder %s82, %s96
      %p98 = scmp.eq.s32.totalorder %s30, 0
      %p99 = por %p97, %p98
      %s101 = sadd.s32 %s100, 1
      %p104 = scmp.eq.s32.totalorder %s24, 1
      %p105 = scmp.ne.s32.totalorder %s100, %s102
      %p106 = scmp.eq.s32.totalorder %s24, 0
      %p107 = por %p105, %p106
      %p108 = scmp.ne.s32.totalorder %s100, %s102
      %p109 = scmp.eq.s32.totalorder %s29, 1
      %p110 = por %p108, %p109
      %p111 = scmp.ne.s32.totalorder %s102, %s103
      %p112 = scmp.eq.s32.totalorder %s29, 0
      %p113 = por %p111, %p112
      %p114 = scmp.ne.s32.totalorder %s102, %s103
      %p115 = scmp.eq.s32.totalorder %s30, 1
      %p116 = por %p114, %p115
      %p118 = scmp.ne.s32.totalorder %s103, %s117
      %p119 = scmp.eq.s32.totalorder %s30, 0
      %p120 = por %p118, %p119
      %s122 = sadd.s32 %s121, 1
      %p125 = scmp.eq.s32.totalorder %s24, 1
      %p126 = scmp.ne.s32.totalorder %s121, %s123
      %p127 = scmp.eq.s32.totalorder %s24, 0
      %p128 = por %p126, %p127
      %p129 = scmp.ne.s32.totalorder %s121, %s123
      %p130 = scmp.eq.s32.totalorder %s29, 1
      %p131 = por %p129, %p130
      %p132 = scmp.ne.s32.totalorder %s123, %s124
      %p133 = scmp.eq.s32.totalorder %s29, 0
      %p134 = por %p132, %p133
      %p135 = scmp.ne.s32.totalorder %s123, %s124
      %p136 = scmp.eq.s32.totalorder %s30, 1
      %p137 = por %p135, %p136
      %p139 = scmp.ne.s32.totalorder %s124, %s138
      %p140 = scmp.eq.s32.totalorder %s30, 0
      %p141 = por %p139, %p140
      %s143 = sadd.s32 %s142, 1
      %p146 = scmp.eq.s32.totalorder %s24, 1
      %p147 = scmp.ne.s32.totalorder %s142, %s144
      %p148 = scmp.eq.s32.totalorder %s24, 0
      %p149 = por %p147, %p148
      %p150 = scmp.ne.s32.totalorder %s142, %s144
      %p151 = scmp.eq.s32.totalorder %s29, 1
      %p152 = por %p150, %p151
      %p153 = scmp.ne.s32.totalorder %s144, %s145
      %p154 = scmp.eq.s32.totalorder %s29, 0
      %p155 = por %p153, %p154
      %p156 = scmp.ne.s32.totalorder %s144, %s145
      %p157 = scmp.eq.s32.totalorder %s30, 1
      %p158 = por %p156, %p157
      %p160 = scmp.ne.s32.totalorder %s145, %s159
      %p161 = scmp.eq.s32.totalorder %s30, 0
      %p162 = por %p160, %p161
      %s164 = sadd.s32 %s163, 1
      %p167 = scmp.eq.s32.totalorder %s24, 1
      %p168 = scmp.ne.s32.totalorder %s163, %s165
      %p169 = scmp.eq.s32.totalorder %s24, 0
      %p170 = por %p168, %p169
      %p171 = scmp.ne.s32.totalorder %s163, %s165
      %p172 = scmp.eq.s32.totalorder %s29, 1
      %p173 = por %p171, %p172
      %p174 = scmp.ne.s32.totalorder %s165, %s166
      %p175 = scmp.eq.s32.totalorder %s29, 0
      %p176 = por %p174, %p175
      %p177 = scmp.ne.s32.totalorder %s165, %s166
      %p178 = scmp.eq.s32.totalorder %s30, 1
      %p179 = por %p177, %p178
      %p181 = scmp.ne.s32.totalorder %s166, %s180
      %p182 = scmp.eq.s32.totalorder %s30, 0
      %p183 = por %p181, %p182
      %s185 = sadd.s32 %s184, 1
      %p188 = scmp.eq.s32.totalorder %s24, 1
      %p189 = scmp.ne.s32.totalorder %s184, %s186
      %p190 = scmp.eq.s32.totalorder %s24, 0
      %p191 = por %p189, %p190
      %p192 = scmp.ne.s32.totalorder %s184, %s186
      %p193 = scmp.eq.s32.totalorder %s29, 1
      %p194 = por %p192, %p193
      %p195 = scmp.ne.s32.totalorder %s186, %s187
      %p196 = scmp.eq.s32.totalorder %s29, 0
      %p197 = por %p195, %p196
      %p198 = scmp.ne.s32.totalorder %s186, %s187
      %p199 = scmp.eq.s32.totalorder %s30, 1
      %p200 = por %p198, %p199
      %p202 = scmp.ne.s32.totalorder %s187, %s201
      %p203 = scmp.eq.s32.totalorder %s30, 0
      %p204 = por %p202, %p203
      %s206 = sadd.s32 %s205, 1
      %p209 = scmp.eq.s32.totalorder %s24, 1
      %p210 = scmp.ne.s32.totalorder %s205, %s207
      %p211 = scmp.eq.s32.totalorder %s24, 0
      %p212 = por %p210, %p211
      %p213 = scmp.ne.s32.totalorder %s205, %s207
      %p214 = scmp.eq.s32.totalorder %s29, 1
      %p215 = por %p213, %p214
      %p216 = scmp.ne.s32.totalorder %s207, %s208
      %p217 = scmp.eq.s32.totalorder %s29, 0
      %p218 = por %p216, %p217
      %p219 = scmp.ne.s32.totalorder %s207, %s208
      %p220 = scmp.eq.s32.totalorder %s30, 1
      %p221 = por %p219, %p220
      %p223 = scmp.ne.s32.totalorder %s208, %s222
      %p224 = scmp.eq.s32.totalorder %s30, 0
      %p225 = por %p223, %p224
      %s227 = sadd.s32 %s226, 1
      %p230 = scmp.eq.s32.totalorder %s24, 1
      %p231 = scmp.ne.s32.totalorder %s226, %s228
      %p232 = scmp.eq.s32.totalorder %s24, 0
      %p233 = por %p231, %p232
      %p234 = scmp.ne.s32.totalorder %s226, %s228
      %p235 = scmp.eq.s32.totalorder %s29, 1
      %p236 = por %p234, %p235
      %p237 = scmp.ne.s32.totalorder %s228, %s229
      %p238 = scmp.eq.s32.totalorder %s29, 0
      %p239 = por %p237, %p238
      %p240 = scmp.ne.s32.totalorder %s228, %s229
      %p241 = scmp.eq.s32.totalorder %s30, 1
      %p242 = por %p240, %p241
      %p244 = scmp.ne.s32.totalorder %s229, %s243
      %p245 = scmp.eq.s32.totalorder %s30, 0
      %p246 = por %p244, %p245
      %s248 = sadd.s32 %s247, 1
      %p251 = scmp.eq.s32.totalorder %s24, 1
      %p252 = scmp.ne.s32.totalorder %s247, %s249
      %p253 = scmp.eq.s32.totalorder %s24, 0
      %p254 = por %p252, %p253
      %p255 = scmp.ne.s32.totalorder %s247, %s249
      %p256 = scmp.eq.s32.totalorder %s29, 1
      %p257 = por %p255, %p256
      %p258 = scmp.ne.s32.totalorder %s249, %s250
      %p259 = scmp.eq.s32.totalorder %s29, 0
      %p260 = por %p258, %p259
      %p261 = scmp.ne.s32.totalorder %s249, %s250
      %p262 = scmp.eq.s32.totalorder %s30, 1
      %p263 = por %p261, %p262
      %p265 = scmp.ne.s32.totalorder %s250, %s264
      %p266 = scmp.eq.s32.totalorder %s30, 0
      %p267 = por %p265, %p266
      %s269 = sadd.s32 %s268, 1
      %p272 = scmp.eq.s32.totalorder %s24, 1
      %p273 = scmp.ne.s32.totalorder %s268, %s270
      %p274 = scmp.eq.s32.totalorder %s24, 0
      %p275 = por %p273, %p274
      %p276 = scmp.ne.s32.totalorder %s268, %s270
      %p277 = scmp.eq.s32.totalorder %s29, 1
      %p278 = por %p276, %p277
      %p279 = scmp.ne.s32.totalorder %s270, %s271
      %p280 = scmp.eq.s32.totalorder %s29, 0
      %p281 = por %p279, %p280
      %p282 = scmp.ne.s32.totalorder %s270, %s271
      %p283 = scmp.eq.s32.totalorder %s30, 1
      %p284 = por %p282, %p283
      %p286 = scmp.ne.s32.totalorder %s271, %s285
      %p287 = scmp.eq.s32.totalorder %s30, 0
      %p288 = por %p286, %p287
      %s289 = ssub.s32 %s24, %s31
      %p290 = scmp.eq.s32.totalorder %s289, 0
      %s292 = sadd.s32 %s291, 1
      %s293 = scalar_select %p290, %s291, %s292
      %p296 = pneg %p290
      %p297 = scmp.eq.s32.totalorder %s24, 1
      %p298 = por %p296, %p297
      %p299 = scmp.ne.s32.totalorder %s291, %s294
      %p300 = scmp.eq.s32.totalorder %s24, 0
      %p301 = por %p299, %p300
      %p302 = scmp.ne.s32.totalorder %s291, %s294
      %p303 = scmp.eq.s32.totalorder %s29, 1
      %p304 = por %p302, %p303
      %p305 = scmp.ne.s32.totalorder %s294, %s295
      %p306 = scmp.eq.s32.totalorder %s29, 0
      %p307 = por %p305, %p306
      %p308 = scmp.ne.s32.totalorder %s294, %s295
      %p309 = scmp.eq.s32.totalorder %s30, 1
      %p310 = por %p308, %p309
      %p312 = scmp.ne.s32.totalorder %s295, %s311
      %p313 = scmp.eq.s32.totalorder %s30, 0
      %p314 = por %p312, %p313
      %p315 = scmp.le.s32.totalorder 1, %s24
      %p316 = scmp.lt.s32.totalorder %s24, 3
      %p317 = pnand %p315, %p316
      %p318 = pneg %p317
      // Predicated region
      $region9: #{tpu_custom_call.1} parent=5 // pred_check
        _
      $region10: #{tpu_custom_call.1} parent=5 // pred_check_branch
        %320 = sbr.rel (%p317) target = $region12
      $region11: #{tpu_custom_call.1} parent=5 // pred_region
        %s321 = ssub.s32 %s24, 1
        // Predicated region
        $region13: #{tpu_custom_call.1} parent=11 // pred_check
          %p322 = pneg %p71
        $region14: #{tpu_custom_call.1} parent=11 // pred_check_branch
          %324 = sbr.rel (%p322) target = $region16
        $region15: #{tpu_custom_call.1} parent=11 // pred_region
          _
        $region16: #{tpu_custom_call.1} parent=11 // pred_fallthru
          _
        // Predicated region
        $region17: #{tpu_custom_call.1} parent=11 // pred_check
          %p325 = pneg %p92
        $region18: #{tpu_custom_call.1} parent=11 // pred_check_branch
          %327 = sbr.rel (%p325) target = $region20
        $region19: #{tpu_custom_call.1} parent=11 // pred_region
          _
        $region20: #{tpu_custom_call.1} parent=11 // pred_fallthru
          _
        // Predicated region
        $region21: #{tpu_custom_call.1} parent=11 // pred_check
          %p328 = pneg %p113
        $region22: #{tpu_custom_call.1} parent=11 // pred_check_branch
          %330 = sbr.rel (%p328) target = $region24
        $region23: #{tpu_custom_call.1} parent=11 // pred_region
          _
        $region24: #{tpu_custom_call.1} parent=11 // pred_fallthru
          _
        // Predicated region
        $region25: #{tpu_custom_call.1} parent=11 // pred_check
          %p331 = pneg %p134
        $region26: #{tpu_custom_call.1} parent=11 // pred_check_branch
          %333 = sbr.rel (%p331) target = $region28
        $region27: #{tpu_custom_call.1} parent=11 // pred_region
          _
        $region28: #{tpu_custom_call.1} parent=11 // pred_fallthru
          _
        // Predicated region
        $region29: #{tpu_custom_call.1} parent=11 // pred_check
          %p334 = pneg %p155
        $region30: #{tpu_custom_call.1} parent=11 // pred_check_branch
          %336 = sbr.rel (%p334) target = $region32
        $region31: #{tpu_custom_call.1} parent=11 // pred_region
          _
        $region32: #{tpu_custom_call.1} parent=11 // pred_fallthru
          _
        // Predicated region
        $region33: #{tpu_custom_call.1} parent=11 // pred_check
          %p337 = pneg %p176
        $region34: #{tpu_custom_call.1} parent=11 // pred_check_branch
          %339 = sbr.rel (%p337) target = $region36
        $region35: #{tpu_custom_call.1} parent=11 // pred_region
          _
        $region36: #{tpu_custom_call.1} parent=11 // pred_fallthru
          _
        // Predicated region
        $region37: #{tpu_custom_call.1} parent=11 // pred_check
          %p340 = pneg %p197
        $region38: #{tpu_custom_call.1} parent=11 // pred_check_branch
          %342 = sbr.rel (%p340) target = $region40
        $region39: #{tpu_custom_call.1} parent=11 // pred_region
          _
        $region40: #{tpu_custom_call.1} parent=11 // pred_fallthru
          _
        // Predicated region
        $region41: #{tpu_custom_call.1} parent=11 // pred_check
          %p343 = pneg %p218
        $region42: #{tpu_custom_call.1} parent=11 // pred_check_branch
          %345 = sbr.rel (%p343) target = $region44
        $region43: #{tpu_custom_call.1} parent=11 // pred_region
          _
        $region44: #{tpu_custom_call.1} parent=11 // pred_fallthru
          _
        // Predicated region
        $region45: #{tpu_custom_call.1} parent=11 // pred_check
          %p346 = pneg %p239
        $region46: #{tpu_custom_call.1} parent=11 // pred_check_branch
          %348 = sbr.rel (%p346) target = $region48
        $region47: #{tpu_custom_call.1} parent=11 // pred_region
          _
        $region48: #{tpu_custom_call.1} parent=11 // pred_fallthru
          _
        // Predicated region
        $region49: #{tpu_custom_call.1} parent=11 // pred_check
          %p349 = pneg %p260
        $region50: #{tpu_custom_call.1} parent=11 // pred_check_branch
          %351 = sbr.rel (%p349) target = $region52
        $region51: #{tpu_custom_call.1} parent=11 // pred_region
          _
        $region52: #{tpu_custom_call.1} parent=11 // pred_fallthru
          _
        // Predicated region
        $region53: #{tpu_custom_call.1} parent=11 // pred_check
          %p352 = pneg %p281
        $region54: #{tpu_custom_call.1} parent=11 // pred_check_branch
          %354 = sbr.rel (%p352) target = $region56
        $region55: #{tpu_custom_call.1} parent=11 // pred_region
          _
        $region56: #{tpu_custom_call.1} parent=11 // pred_fallthru
          _
      $region12: #{tpu_custom_call.1} parent=5 // pred_fallthru
        _
      %p355 = scmp.lt.s32.totalorder %s24, 2
      // Predicated region
      $region57: #{tpu_custom_call.1} parent=5 // pred_check
        %p356 = pneg %p355
      $region58: #{tpu_custom_call.1} parent=5 // pred_check_branch
        %358 = sbr.rel (%p356) target = $region60
      $region59: #{tpu_custom_call.1} parent=5 // pred_region
        // Predicated region
        $region61: #{tpu_custom_call.1} parent=59 // pred_check
          %p359 = pneg %p44
        $region62: #{tpu_custom_call.1} parent=59 // pred_check_branch
          %361 = sbr.rel (%p359) target = $region64
        $region63: #{tpu_custom_call.1} parent=59 // pred_region
          %s362 = sand.u32 %s34, 1
          %s363 = scalar_lea.sflag [#allocation5], %s362
          %s364 = sand.u32 %s34, 1
          %s365 = smul.addr %s364, 16
          %s366 = scalar_lea.vmem [#allocation4], %s365
          %368 = vsyncadd %s363, 0
          %s369 = smul.addr %s24, 2
          %s370 = smul.addr %s369, 8
          %s371 = scalar_lea.hbm %s0, %s370
          %s373 = sshll.u32 %s371, 4
          %s374 = int_to_ptr.hbm [resolvable:$true] %s373
          %s375 = sshll.u32 %s366, 4
          %s376 = int_to_ptr.vmem [resolvable:$true] %s375
          %378 = dma.hbm_to_vmem [thread:$0]  %s374, 256, %s376, %s363
        $region64: #{tpu_custom_call.1} parent=59 // pred_fallthru
          _
      $region60: #{tpu_custom_call.1} parent=5 // pred_fallthru
        _
      %p379 = scmp.le.s32.totalorder 1, %s24
      %p380 = scmp.lt.s32.totalorder %s24, 3
      %p381 = pnand %p379, %p380
      %p382 = pneg %p381
      // Predicated region
      $region65: #{tpu_custom_call.1} parent=5 // pred_check
        _
      $region66: #{tpu_custom_call.1} parent=5 // pred_check_branch
        %384 = sbr.rel (%p381) target = $region68
      $region67: #{tpu_custom_call.1} parent=5 // pred_region
        %s385 = ssub.s32 %s24, 1
        %s386 = sand.u32 %s37, 1
        %s387 = scalar_lea.sflag [#allocation5], %s386
        %s388 = sand.u32 %s37, 1
        %s389 = smul.addr %s388, 16
        %s390 = scalar_lea.vmem [#allocation4], %s389
        // Predicated region
        $region69: #{tpu_custom_call.1} parent=67 // pred_check
          %p391 = pneg %p50
        $region70: #{tpu_custom_call.1} parent=67 // pred_check_branch
          %393 = sbr.rel (%p391) target = $region72
        $region71: #{tpu_custom_call.1} parent=67 // pred_region
          %395 = dma.done %s387, 256
        $region72: #{tpu_custom_call.1} parent=67 // pred_fallthru
          _
        %s396 = sand.u32 %s37, 1
        %s397 = scalar_lea.sflag [#allocation5], %s396
        %s398 = sand.u32 %s37, 1
        %s399 = smul.addr %s398, 16
        %s400 = scalar_lea.vmem [#allocation4], %s399
        %p401 = pneg %p50
        %p402 = pneg %p47
        %p403 = pneg %p71
        %p404 = pneg %p68
        %p405 = pneg %p92
        %p406 = pneg %p89
        %p407 = pneg %p113
        %p408 = pneg %p110
        %p409 = pneg %p134
        %p410 = pneg %p131
        %p411 = pneg %p155
        %p412 = pneg %p152
        %p413 = pneg %p176
        %p414 = pneg %p173
        %p415 = pneg %p197
        %p416 = pneg %p194
        %p417 = pneg %p218
        %p418 = pneg %p215
        %p419 = pneg %p239
        %p420 = pneg %p236
        %p421 = pneg %p260
        %p422 = pneg %p257
        %p423 = pneg %p281
        %p424 = pneg %p278
        %p425 = pneg %p307
        %p426 = pneg %p304
        %s427 = sand.u32 %s294, 1
        %s428 = scalar_lea.sflag [#allocation6], %s427
        %s429 = sand.u32 %s294, 1
        %s430 = smul.addr %s429, 16
        %s431 = scalar_lea.vmem [#allocation7], %s430
        %v432 = vld [vmem:[%s390] sm:$0xff]
        %v433 = vld [vmem:[%s390 + $0x8] sm:$0xff]
        %v434 = vld [vmem:[%s1] sm:$0x7]
        %435 = vst [vmem:[#allocation2] sm:$0xff] 0.0
        %436 = vst [vmem:[#allocation2 + $0x8] sm:$0xff] 0.0
        %437 = vst [vmem:[#allocation2 + $0x10] sm:$0xff] 0.0
        %438 = vst [vmem:[#allocation2 + $0x18] sm:$0xff] 0.0
        %vm439 = vcmask 556032
        %440 = vst.msk [vmem:[#allocation2 + $0x20] sm:$0xff] %vm439, 0.0
        %442 = vrot.lane.b32.xlu0 %v432, 19
        %v443 = vpop.permute.xlu0 %442
        %vm445 = vcmask 285848
        %446 = vst.msk [vmem:[#allocation2 + $0x8] sm:$0xff] %vm445, %v443
        %447 = vrot.lane.b32.xlu0 %v432, 21
        %v448 = vpop.permute.xlu0 %447
        %vm450 = vcmask 433448
        %451 = vst.msk [vmem:[#allocation2 + $0x8] sm:$0xff] %vm450, %v448
        %452 = vrot.lane.b32.xlu0 %v432, 23
        %v453 = vpop.permute.xlu0 %452
        %vm455 = vcmask 581048
        %456 = vst.msk [vmem:[#allocation2 + $0x8] sm:$0xff] %vm455, %v453
        %457 = vrot.lane.b32.xlu0 %v432, 25
        %v458 = vpop.permute.xlu0 %457
        %vm460 = vcmask 728648
        %461 = vst.msk [vmem:[#allocation2 + $0x8] sm:$0xff] %vm460, %v458
        %462 = vrot.lane.b32.xlu0 %v432, 27
        %v463 = vpop.permute.xlu0 %462
        %vm465 = vcmask 876248
        %466 = vst.msk [vmem:[#allocation2 + $0x8] sm:$0xff] %vm465, %v463
        %467 = vrot.lane.b32.xlu0 %v432, 29
        %v468 = vpop.permute.xlu0 %467
        %vm470 = vcmask 1023848
        %471 = vst.msk [vmem:[#allocation2 + $0x8] sm:$0xff] %vm470, %v468
        %472 = vrot.lane.b32.xlu0 %v432, 31
        %v473 = vpop.permute.xlu0 %472
        %vm475 = vcmask 1048568
        %476 = vst.msk [vmem:[#allocation2 + $0x8] sm:$0xff] %vm475, %v473
        %vm477 = vcmask 121856
        %478 = vst.msk [vmem:[#allocation2 + $0x10] sm:$0xff] %vm477, %v473
        %479 = vrot.lane.b32.xlu0 %v432, 33
        %v480 = vpop.permute.xlu0 %479
        %vm482 = vcmask 269448
        %483 = vst.msk [vmem:[#allocation2 + $0x10] sm:$0xff] %vm482, %v480
        %485 = vrot.lane.b32.xlu0 %v433, 35
        %v486 = vpop.permute.xlu0 %485
        %vm488 = vcmask 417048
        %489 = vst.msk [vmem:[#allocation2 + $0x10] sm:$0xff] %vm488, %v486
        %490 = vrot.lane.b32.xlu0 %v433, 37
        %v491 = vpop.permute.xlu0 %490
        %vm493 = vcmask 564648
        %494 = vst.msk [vmem:[#allocation2 + $0x10] sm:$0xff] %vm493, %v491
        %495 = vrot.lane.b32.xlu0 %v433, 39
        %v496 = vpop.permute.xlu0 %495
        %vm498 = vcmask 712248
        %499 = vst.msk [vmem:[#allocation2 + $0x10] sm:$0xff] %vm498, %v496
        %500 = vrot.lane.b32.xlu0 %v433, 41
        %v501 = vpop.permute.xlu0 %500
        %vm503 = vcmask 859848
        %504 = vst.msk [vmem:[#allocation2 + $0x10] sm:$0xff] %vm503, %v501
        %505 = vrot.lane.b32.xlu0 %v433, 43
        %v506 = vpop.permute.xlu0 %505
        %vm508 = vcmask 1007448
        %509 = vst.msk [vmem:[#allocation2 + $0x10] sm:$0xff] %vm508, %v506
        %510 = vrot.lane.b32.xlu0 %v433, 45
        %v511 = vpop.permute.xlu0 %510
        %vm513 = vcmask 1048552
        %514 = vst.msk [vmem:[#allocation2 + $0x10] sm:$0xff] %vm513, %v511
        %vm515 = vcmask 105472
        %516 = vst.msk [vmem:[#allocation2 + $0x18] sm:$0xff] %vm515, %v511
        %517 = vrot.lane.b32.xlu0 %v433, 47
        %v518 = vpop.permute.xlu0 %517
        %vm520 = vcmask 253048
        %521 = vst.msk [vmem:[#allocation2 + $0x18] sm:$0xff] %vm520, %v518
        %522 = vrot.lane.b32.xlu0 %v433, 49
        %v523 = vpop.permute.xlu0 %522
        %vm525 = vcmask 400648
        %526 = vst.msk [vmem:[#allocation2 + $0x18] sm:$0xff] %vm525, %v523
        %v527 = vld [vmem:[#allocation2] sm:$0xff]
        %v528 = vld [vmem:[#allocation2 + $0x8] sm:$0xff]
        %v529 = vld [vmem:[#allocation2 + $0x10] sm:$0xff]
        %v530 = vld [vmem:[#allocation2 + $0x18] sm:$0xff]
        %535 = vrot.lane.b32.xlu0 %v527, 19
        %v536 = vpop.permute.xlu0 %535
        %537 = vrot.lane.b32.xlu0 %v528, 19
        %v538 = vpop.permute.xlu0 %537
        %539 = vrot.lane.b32.xlu0 %v529, 19
        %v540 = vpop.permute.xlu0 %539
        %541 = vrot.lane.b32.xlu0 %v530, 19
        %v542 = vpop.permute.xlu0 %541
        %vm543 = vcmask 154624
        %v544 = vsel %vm543, %v536, %v538
        %v545 = vsel %vm543, %v538, %v540
        %v546 = vsel %vm543, %v540, %v542
        %550 = vst [vmem:[#allocation3] sm:$0xff] %v544
        %551 = vst [vmem:[#allocation3 + $0x8] sm:$0xff] %v545
        %552 = vst.msk [vmem:[#allocation3 + $0x10] sm:$0xff] %vm439, %v546
        %v553 = vld [vmem:[#allocation2] sm:$0xff]
        %v554 = vld [vmem:[#allocation2 + $0x8] sm:$0xff]
        %v555 = vld [vmem:[#allocation2 + $0x10] sm:$0xff]
        %v556 = vld [vmem:[#allocation2 + $0x18] sm:$0xff]
        %561 = vrot.lane.b32.xlu0 %v553, 18
        %v562 = vpop.permute.xlu0 %561
        %563 = vrot.lane.b32.xlu0 %v554, 18
        %v564 = vpop.permute.xlu0 %563
        %565 = vrot.lane.b32.xlu0 %v555, 18
        %v566 = vpop.permute.xlu0 %565
        %567 = vrot.lane.b32.xlu0 %v556, 18
        %v568 = vpop.permute.xlu0 %567
        %vm569 = vcmask 146432
        %v570 = vsel %vm569, %v562, %v564
        %v571 = vsel %vm569, %v564, %v566
        %v572 = vsel %vm569, %v566, %v568
        %576 = vst [vmem:[#allocation3 + $0x18] sm:$0xff] %v570
        %577 = vst [vmem:[#allocation3 + $0x20] sm:$0xff] %v571
        %578 = vst.msk [vmem:[#allocation3 + $0x28] sm:$0xff] %vm439, %v572
        %v579 = vld [vmem:[#allocation2] sm:$0xff]
        %v580 = vld [vmem:[#allocation2 + $0x8] sm:$0xff]
        %v581 = vld [vmem:[#allocation2 + $0x10] sm:$0xff]
        %v582 = vld [vmem:[#allocation2 + $0x18] sm:$0xff]
        %587 = vrot.lane.b32.xlu0 %v579, 17
        %v588 = vpop.permute.xlu0 %587
        %589 = vrot.lane.b32.xlu0 %v580, 17
        %v590 = vpop.permute.xlu0 %589
        %591 = vrot.lane.b32.xlu0 %v581, 17
        %v592 = vpop.permute.xlu0 %591
        %593 = vrot.lane.b32.xlu0 %v582, 17
        %v594 = vpop.permute.xlu0 %593
        %vm595 = vcmask 138240
        %v596 = vsel %vm595, %v588, %v590
        %v597 = vsel %vm595, %v590, %v592
        %v598 = vsel %vm595, %v592, %v594
        %602 = vst [vmem:[#allocation3 + $0x30] sm:$0xff] %v596
        %603 = vst [vmem:[#allocation3 + $0x38] sm:$0xff] %v597
        %604 = vst.msk [vmem:[#allocation3 + $0x40] sm:$0xff] %vm439, %v598
        %v605 = vld [vmem:[#allocation2] sm:$0xff]
        %v606 = vld [vmem:[#allocation2 + $0x8] sm:$0xff]
        %v607 = vld [vmem:[#allocation2 + $0x10] sm:$0xff]
        %v608 = vld [vmem:[#allocation2 + $0x18] sm:$0xff]
        %613 = vrot.lane.b32.xlu0 %v605, 1
        %v614 = vpop.permute.xlu0 %613
        %615 = vrot.lane.b32.xlu0 %v606, 1
        %v616 = vpop.permute.xlu0 %615
        %617 = vrot.lane.b32.xlu0 %v607, 1
        %v618 = vpop.permute.xlu0 %617
        %619 = vrot.lane.b32.xlu0 %v608, 1
        %v620 = vpop.permute.xlu0 %619
        %vm621 = vcmask 7168
        %v622 = vsel %vm621, %v614, %v616
        %v623 = vsel %vm621, %v616, %v618
        %v624 = vsel %vm621, %v618, %v620
        %628 = vst [vmem:[#allocation3 + $0x48] sm:$0xff] %v622
        %629 = vst [vmem:[#allocation3 + $0x50] sm:$0xff] %v623
        %630 = vst.msk [vmem:[#allocation3 + $0x58] sm:$0xff] %vm439, %v624
        %v631 = vld [vmem:[#allocation2 + $0x8] sm:$0xff]
        %v632 = vld [vmem:[#allocation2 + $0x10] sm:$0xff]
        %v633 = vld [vmem:[#allocation2 + $0x18] sm:$0xff]
        %634 = vst [vmem:[#allocation3 + $0x60] sm:$0xff] %v631
        %635 = vst [vmem:[#allocation3 + $0x68] sm:$0xff] %v632
        %636 = vst.msk [vmem:[#allocation3 + $0x70] sm:$0xff] %vm439, %v633
        %v637 = vld [vmem:[#allocation2 + $0x8] sm:$0xff]
        %v638 = vld [vmem:[#allocation2 + $0x10] sm:$0xff]
        %v639 = vld [vmem:[#allocation2 + $0x18] sm:$0xff]
        %643 = vrot.lane.b32.xlu0 %v637, 127
        %v644 = vpop.permute.xlu0 %643
        %645 = vrot.lane.b32.xlu0 %v638, 127
        %v646 = vpop.permute.xlu0 %645
        %647 = vrot.lane.b32.xlu0 %v639, 127
        %v648 = vpop.permute.xlu0 %647
        %vm649 = vcmask 1039360
        %v650 = vsel %vm649, %v644, %v646
        %v651 = vsel %vm649, %v646, %v648
        %655 = vst [vmem:[#allocation3 + $0x78] sm:$0xff] %v650
        %656 = vst [vmem:[#allocation3 + $0x80] sm:$0xff] %v651
        %657 = vst.msk [vmem:[#allocation3 + $0x88] sm:$0xff] %vm439, %v648
        %v658 = vld [vmem:[#allocation2 + $0x8] sm:$0xff]
        %v659 = vld [vmem:[#allocation2 + $0x10] sm:$0xff]
        %v660 = vld [vmem:[#allocation2 + $0x18] sm:$0xff]
        %664 = vrot.lane.b32.xlu0 %v658, 111
        %v665 = vpop.permute.xlu0 %664
        %666 = vrot.lane.b32.xlu0 %v659, 111
        %v667 = vpop.permute.xlu0 %666
        %668 = vrot.lane.b32.xlu0 %v660, 111
        %v669 = vpop.permute.xlu0 %668
        %vm670 = vcmask 908288
        %v671 = vsel %vm670, %v665, %v667
        %v672 = vsel %vm670, %v667, %v669
        %676 = vst [vmem:[#allocation3 + $0x90] sm:$0xff] %v671
        %677 = vst [vmem:[#allocation3 + $0x98] sm:$0xff] %v672
        %678 = vst.msk [vmem:[#allocation3 + $0xa0] sm:$0xff] %vm439, %v669
        %v679 = vld [vmem:[#allocation2 + $0x8] sm:$0xff]
        %v680 = vld [vmem:[#allocation2 + $0x10] sm:$0xff]
        %v681 = vld [vmem:[#allocation2 + $0x18] sm:$0xff]
        %685 = vrot.lane.b32.xlu0 %v679, 110
        %v686 = vpop.permute.xlu0 %685
        %687 = vrot.lane.b32.xlu0 %v680, 110
        %v688 = vpop.permute.xlu0 %687
        %689 = vrot.lane.b32.xlu0 %v681, 110
        %v690 = vpop.permute.xlu0 %689
        %vm691 = vcmask 900096
        %v692 = vsel %vm691, %v686, %v688
        %v693 = vsel %vm691, %v688, %v690
        %697 = vst [vmem:[#allocation3 + $0xa8] sm:$0xff] %v692
        %698 = vst [vmem:[#allocation3 + $0xb0] sm:$0xff] %v693
        %699 = vst.msk [vmem:[#allocation3 + $0xb8] sm:$0xff] %vm439, %v690
        %v700 = vld [vmem:[#allocation2 + $0x8] sm:$0xff]
        %v701 = vld [vmem:[#allocation2 + $0x10] sm:$0xff]
        %v702 = vld [vmem:[#allocation2 + $0x18] sm:$0xff]
        %706 = vrot.lane.b32.xlu0 %v700, 109
        %v707 = vpop.permute.xlu0 %706
        %708 = vrot.lane.b32.xlu0 %v701, 109
        %v709 = vpop.permute.xlu0 %708
        %710 = vrot.lane.b32.xlu0 %v702, 109
        %v711 = vpop.permute.xlu0 %710
        %vm712 = vcmask 891904
        %v713 = vsel %vm712, %v707, %v709
        %v714 = vsel %vm712, %v709, %v711
        %718 = vst [vmem:[#allocation3 + $0xc0] sm:$0xff] %v713
        %719 = vst [vmem:[#allocation3 + $0xc8] sm:$0xff] %v714
        %720 = vst.msk [vmem:[#allocation3 + $0xd0] sm:$0xff] %vm439, %v711
        %v721 = vld [vmem:[%s2] sm:$0xff]
        %v722 = vld [vmem:[#allocation3] sm:$0xff]
        %v723 = vld [vmem:[#allocation3 + $0x8] sm:$0xff]
        %v724 = vld [vmem:[#allocation3 + $0x10] sm:$0xff]
        %v725 = vld [vmem:[#allocation3 + $0x18] sm:$0xff]
        %v726 = vld [vmem:[#allocation3 + $0x20] sm:$0xff]
        %v727 = vld [vmem:[#allocation3 + $0x28] sm:$0xff]
        %v728 = vld [vmem:[#allocation3 + $0x30] sm:$0xff]
        %v729 = vld [vmem:[#allocation3 + $0x38] sm:$0xff]
        %v730 = vld [vmem:[#allocation3 + $0x40] sm:$0xff]
        %v731 = vld [vmem:[#allocation3 + $0x48] sm:$0xff]
        %v732 = vld [vmem:[#allocation3 + $0x50] sm:$0xff]
        %v733 = vld [vmem:[#allocation3 + $0x58] sm:$0xff]
        %v734 = vld [vmem:[#allocation3 + $0x60] sm:$0xff]
        %v735 = vld [vmem:[#allocation3 + $0x68] sm:$0xff]
        %v736 = vld [vmem:[#allocation3 + $0x70] sm:$0xff]
        %v737 = vld [vmem:[#allocation3 + $0x78] sm:$0xff]
        %v738 = vld [vmem:[#allocation3 + $0x80] sm:$0xff]
        %v739 = vld [vmem:[#allocation3 + $0x88] sm:$0xff]
        %v740 = vld [vmem:[#allocation3 + $0x90] sm:$0xff]
        %v741 = vld [vmem:[#allocation3 + $0x98] sm:$0xff]
        %v742 = vld [vmem:[#allocation3 + $0xa0] sm:$0xff]
        %v743 = vld [vmem:[#allocation3 + $0xa8] sm:$0xff]
        %v744 = vld [vmem:[#allocation3 + $0xb0] sm:$0xff]
        %v745 = vld [vmem:[#allocation3 + $0xb8] sm:$0xff]
        %v746 = vld [vmem:[#allocation3 + $0xc0] sm:$0xff]
        %v747 = vld [vmem:[#allocation3 + $0xc8] sm:$0xff]
        %v748 = vld [vmem:[#allocation3 + $0xd0] sm:$0xff]
        %v749 = vld [vmem:[%s3] sm:$0xff]
        %751 = vset.pattern.permute.xlu0 0
        %752 = vperm.xlu0 %751, %v749
        %v753 = vpop.permute.xlu0 %752
        %vm755 = vcmask 588800
        %v757 = vsel %vm755, %v721, 0
        %759 = vmatpush.msra.mxu0 0.0
        %760 = vmatpush.msra.mxu0 0.0
        %761 = vmatpush.msra.mxu0 0.0
        %762 = vmatpush.msra.mxu0 0.0
        %763 = vmatpush.msra.mxu0 0.0
        %764 = vmatpush.msra.mxu0 0.0
        %765 = vmatpush.msra.mxu0 0.0
        %766 = vmatpush.msra.mxu0 %v746
        %767 = vmatpush.msra.mxu0 %v743
        %768 = vmatpush.msra.mxu0 %v740
        %769 = vmatpush.msra.mxu0 %v737
        %770 = vmatpush.msra.mxu0 %v734
        %771 = vmatpush.msra.mxu0 %v731
        %772 = vmatpush.msra.mxu0 %v728
        %773 = vmatpush.msra.mxu0 %v725
        %774 = vmatpush.msra.mxu0 %v722
        %775 = vmatmul.f32.gmra.mxu0 %v757
        %v776 = vpop.f32.mrf.mxu0
        %v777 = vadd.f32 %v753, %v776
        %778 = vdwg.mxu0
        %779 = vmatpush.msra.mxu0 0.0
        %780 = vmatpush.msra.mxu0 0.0
        %781 = vmatpush.msra.mxu0 0.0
        %782 = vmatpush.msra.mxu0 0.0
        %783 = vmatpush.msra.mxu0 0.0
        %784 = vmatpush.msra.mxu0 0.0
        %785 = vmatpush.msra.mxu0 0.0
        %786 = vmatpush.msra.mxu0 %v747
        %787 = vmatpush.msra.mxu0 %v744
        %788 = vmatpush.msra.mxu0 %v741
        %789 = vmatpush.msra.mxu0 %v738
        %790 = vmatpush.msra.mxu0 %v735
        %791 = vmatpush.msra.mxu0 %v732
        %792 = vmatpush.msra.mxu0 %v729
        %793 = vmatpush.msra.mxu0 %v726
        %794 = vmatpush.msra.mxu0 %v723
        %795 = vmatmul.f32.gmra.mxu0 %v757
        %v796 = vpop.f32.mrf.mxu0
        %v797 = vadd.f32 %v753, %v796
        %798 = vdwg.mxu0
        %799 = vmatpush.msra.mxu0 0.0
        %800 = vmatpush.msra.mxu0 0.0
        %801 = vmatpush.msra.mxu0 0.0
        %802 = vmatpush.msra.mxu0 0.0
        %803 = vmatpush.msra.mxu0 0.0
        %804 = vmatpush.msra.mxu0 0.0
        %805 = vmatpush.msra.mxu0 0.0
        %806 = vmatpush.msra.mxu0 %v748
        %807 = vmatpush.msra.mxu0 %v745
        %808 = vmatpush.msra.mxu0 %v742
        %809 = vmatpush.msra.mxu0 %v739
        %810 = vmatpush.msra.mxu0 %v736
        %811 = vmatpush.msra.mxu0 %v733
        %812 = vmatpush.msra.mxu0 %v730
        %813 = vmatpush.msra.mxu0 %v727
        %814 = vmatpush.msra.mxu0 %v724
        %815 = vmatmul.f32.gmra.mxu0 %v757
        %v816 = vpop.f32.mrf.mxu0
        %v817 = vadd.f32 %v753, %v816
        %818 = vdwg.mxu0
        %vm819 = vcmp.ge.f32.partialorder %v777, 0.0
        %vm820 = vcmp.ge.f32.partialorder %v797, 0.0
        %vm821 = vcmp.ge.f32.partialorder %v817, 0.0
        %v822 = vld [vmem:[%s4] sm:$0xff]
        %824 = vset.pattern.permute.xlu0 0
        %825 = vperm.xlu0 %824, %v822
        %v826 = vpop.permute.xlu0 %825
        %v828 = vmul.f32 %v826, %v777
        %v829 = vmul.f32 %v826, %v797
        %v830 = vmul.f32 %v826, %v817
        %v831 = vsel %vm819, %v777, %v828
        %v832 = vsel %vm820, %v797, %v829
        %v833 = vsel %vm821, %v817, %v830
        %v835 = vperm.slane %v434, 0
        %v836 = vperm.slane %v434, 1
        %v837 = vperm.slane %v434, 2
        %v841 = vmul.f32 %v831, %v835
        %v842 = vmul.f32 %v832, %v836
        %v843 = vmul.f32 %v833, %v837
        %844 = vst [vmem:[#allocation2 + $0x8] sm:$0xff] %v841
        %845 = vst [vmem:[#allocation2 + $0x10] sm:$0xff] %v842
        %846 = vst.msk [vmem:[#allocation2 + $0x18] sm:$0xff] %vm439, %v843
        %v847 = vld [vmem:[#allocation2] sm:$0xff]
        %v848 = vld [vmem:[#allocation2 + $0x8] sm:$0xff]
        %v849 = vld [vmem:[#allocation2 + $0x10] sm:$0xff]
        %v850 = vld [vmem:[#allocation2 + $0x18] sm:$0xff]
        %855 = vrot.lane.b32.xlu0 %v847, 19
        %v856 = vpop.permute.xlu0 %855
        %857 = vrot.lane.b32.xlu0 %v848, 19
        %v858 = vpop.permute.xlu0 %857
        %859 = vrot.lane.b32.xlu0 %v849, 19
        %v860 = vpop.permute.xlu0 %859
        %861 = vrot.lane.b32.xlu0 %v850, 19
        %v862 = vpop.permute.xlu0 %861
        %v863 = vsel %vm543, %v856, %v858
        %v864 = vsel %vm543, %v858, %v860
        %v865 = vsel %vm543, %v860, %v862
        %869 = vst [vmem:[#allocation3] sm:$0xff] %v863
        %870 = vst [vmem:[#allocation3 + $0x8] sm:$0xff] %v864
        %871 = vst.msk [vmem:[#allocation3 + $0x10] sm:$0xff] %vm439, %v865
        %v872 = vld [vmem:[#allocation2] sm:$0xff]
        %v873 = vld [vmem:[#allocation2 + $0x8] sm:$0xff]
        %v874 = vld [vmem:[#allocation2 + $0x10] sm:$0xff]
        %v875 = vld [vmem:[#allocation2 + $0x18] sm:$0xff]
        %880 = vrot.lane.b32.xlu0 %v872, 18
        %v881 = vpop.permute.xlu0 %880
        %882 = vrot.lane.b32.xlu0 %v873, 18
        %v883 = vpop.permute.xlu0 %882
        %884 = vrot.lane.b32.xlu0 %v874, 18
        %v885 = vpop.permute.xlu0 %884
        %886 = vrot.lane.b32.xlu0 %v875, 18
        %v887 = vpop.permute.xlu0 %886
        %v888 = vsel %vm569, %v881, %v883
        %v889 = vsel %vm569, %v883, %v885
        %v890 = vsel %vm569, %v885, %v887
        %894 = vst [vmem:[#allocation3 + $0x18] sm:$0xff] %v888
        %895 = vst [vmem:[#allocation3 + $0x20] sm:$0xff] %v889
        %896 = vst.msk [vmem:[#allocation3 + $0x28] sm:$0xff] %vm439, %v890
        %v897 = vld [vmem:[#allocation2] sm:$0xff]
        %v898 = vld [vmem:[#allocation2 + $0x8] sm:$0xff]
        %v899 = vld [vmem:[#allocation2 + $0x10] sm:$0xff]
        %v900 = vld [vmem:[#allocation2 + $0x18] sm:$0xff]
        %905 = vrot.lane.b32.xlu0 %v897, 17
        %v906 = vpop.permute.xlu0 %905
        %907 = vrot.lane.b32.xlu0 %v898, 17
        %v908 = vpop.permute.xlu0 %907
        %909 = vrot.lane.b32.xlu0 %v899, 17
        %v910 = vpop.permute.xlu0 %909
        %911 = vrot.lane.b32.xlu0 %v900, 17
        %v912 = vpop.permute.xlu0 %911
        %v913 = vsel %vm595, %v906, %v908
        %v914 = vsel %vm595, %v908, %v910
        %v915 = vsel %vm595, %v910, %v912
        %919 = vst [vmem:[#allocation3 + $0x30] sm:$0xff] %v913
        %920 = vst [vmem:[#allocation3 + $0x38] sm:$0xff] %v914
        %921 = vst.msk [vmem:[#allocation3 + $0x40] sm:$0xff] %vm439, %v915
        %v922 = vld [vmem:[#allocation2] sm:$0xff]
        %v923 = vld [vmem:[#allocation2 + $0x8] sm:$0xff]
        %v924 = vld [vmem:[#allocation2 + $0x10] sm:$0xff]
        %v925 = vld [vmem:[#allocation2 + $0x18] sm:$0xff]
        %930 = vrot.lane.b32.xlu0 %v922, 1
        %v931 = vpop.permute.xlu0 %930
        %932 = vrot.lane.b32.xlu0 %v923, 1
        %v933 = vpop.permute.xlu0 %932
        %934 = vrot.lane.b32.xlu0 %v924, 1
        %v935 = vpop.permute.xlu0 %934
        %936 = vrot.lane.b32.xlu0 %v925, 1
        %v937 = vpop.permute.xlu0 %936
        %v938 = vsel %vm621, %v931, %v933
        %v939 = vsel %vm621, %v933, %v935
        %v940 = vsel %vm621, %v935, %v937
        %944 = vst [vmem:[#allocation3 + $0x48] sm:$0xff] %v938
        %945 = vst [vmem:[#allocation3 + $0x50] sm:$0xff] %v939
        %946 = vst.msk [vmem:[#allocation3 + $0x58] sm:$0xff] %vm439, %v940
        %v947 = vld [vmem:[#allocation2 + $0x8] sm:$0xff]
        %v948 = vld [vmem:[#allocation2 + $0x10] sm:$0xff]
        %v949 = vld [vmem:[#allocation2 + $0x18] sm:$0xff]
        %950 = vst [vmem:[#allocation3 + $0x60] sm:$0xff] %v947
        %951 = vst [vmem:[#allocation3 + $0x68] sm:$0xff] %v948
        %952 = vst.msk [vmem:[#allocation3 + $0x70] sm:$0xff] %vm439, %v949
        %v953 = vld [vmem:[#allocation2 + $0x8] sm:$0xff]
        %v954 = vld [vmem:[#allocation2 + $0x10] sm:$0xff]
        %v955 = vld [vmem:[#allocation2 + $0x18] sm:$0xff]
        %959 = vrot.lane.b32.xlu0 %v953, 127
        %v960 = vpop.permute.xlu0 %959
        %961 = vrot.lane.b32.xlu0 %v954, 127
        %v962 = vpop.permute.xlu0 %961
        %963 = vrot.lane.b32.xlu0 %v955, 127
        %v964 = vpop.permute.xlu0 %963
        %v965 = vsel %vm649, %v960, %v962
        %v966 = vsel %vm649, %v962, %v964
        %970 = vst [vmem:[#allocation3 + $0x78] sm:$0xff] %v965
        %971 = vst [vmem:[#allocation3 + $0x80] sm:$0xff] %v966
        %972 = vst.msk [vmem:[#allocation3 + $0x88] sm:$0xff] %vm439, %v964
        %v973 = vld [vmem:[#allocation2 + $0x8] sm:$0xff]
        %v974 = vld [vmem:[#allocation2 + $0x10] sm:$0xff]
        %v975 = vld [vmem:[#allocation2 + $0x18] sm:$0xff]
        %979 = vrot.lane.b32.xlu0 %v973, 111
        %v980 = vpop.permute.xlu0 %979
        %981 = vrot.lane.b32.xlu0 %v974, 111
        %v982 = vpop.permute.xlu0 %981
        %983 = vrot.lane.b32.xlu0 %v975, 111
        %v984 = vpop.permute.xlu0 %983
        %v985 = vsel %vm670, %v980, %v982
        %v986 = vsel %vm670, %v982, %v984
        %990 = vst [vmem:[#allocation3 + $0x90] sm:$0xff] %v985
        %991 = vst [vmem:[#allocation3 + $0x98] sm:$0xff] %v986
        %992 = vst.msk [vmem:[#allocation3 + $0xa0] sm:$0xff] %vm439, %v984
        %v993 = vld [vmem:[#allocation2 + $0x8] sm:$0xff]
        %v994 = vld [vmem:[#allocation2 + $0x10] sm:$0xff]
        %v995 = vld [vmem:[#allocation2 + $0x18] sm:$0xff]
        %999 = vrot.lane.b32.xlu0 %v993, 110
        %v1000 = vpop.permute.xlu0 %999
        %1001 = vrot.lane.b32.xlu0 %v994, 110
        %v1002 = vpop.permute.xlu0 %1001
        %1003 = vrot.lane.b32.xlu0 %v995, 110
        %v1004 = vpop.permute.xlu0 %1003
        %v1005 = vsel %vm691, %v1000, %v1002
        %v1006 = vsel %vm691, %v1002, %v1004
        %1010 = vst [vmem:[#allocation3 + $0xa8] sm:$0xff] %v1005
        %1011 = vst [vmem:[#allocation3 + $0xb0] sm:$0xff] %v1006
        %1012 = vst.msk [vmem:[#allocation3 + $0xb8] sm:$0xff] %vm439, %v1004
        %v1013 = vld [vmem:[#allocation2 + $0x8] sm:$0xff]
        %v1014 = vld [vmem:[#allocation2 + $0x10] sm:$0xff]
        %v1015 = vld [vmem:[#allocation2 + $0x18] sm:$0xff]
        %1019 = vrot.lane.b32.xlu0 %v1013, 109
        %v1020 = vpop.permute.xlu0 %1019
        %1021 = vrot.lane.b32.xlu0 %v1014, 109
        %v1022 = vpop.permute.xlu0 %1021
        %1023 = vrot.lane.b32.xlu0 %v1015, 109
        %v1024 = vpop.permute.xlu0 %1023
        %v1025 = vsel %vm712, %v1020, %v1022
        %v1026 = vsel %vm712, %v1022, %v1024
        %1030 = vst [vmem:[#allocation3 + $0xc0] sm:$0xff] %v1025
        %1031 = vst [vmem:[#allocation3 + $0xc8] sm:$0xff] %v1026
        %1032 = vst.msk [vmem:[#allocation3 + $0xd0] sm:$0xff] %vm439, %v1024
        %v1033 = vld [vmem:[%s5] sm:$0xff]
        %v1034 = vld [vmem:[#allocation3] sm:$0xff]
        %v1035 = vld [vmem:[#allocation3 + $0x8] sm:$0xff]
        %v1036 = vld [vmem:[#allocation3 + $0x10] sm:$0xff]
        %v1037 = vld [vmem:[#allocation3 + $0x18] sm:$0xff]
        %v1038 = vld [vmem:[#allocation3 + $0x20] sm:$0xff]
        %v1039 = vld [vmem:[#allocation3 + $0x28] sm:$0xff]
        %v1040 = vld [vmem:[#allocation3 + $0x30] sm:$0xff]
        %v1041 = vld [vmem:[#allocation3 + $0x38] sm:$0xff]
        %v1042 = vld [vmem:[#allocation3 + $0x40] sm:$0xff]
        %v1043 = vld [vmem:[#allocation3 + $0x48] sm:$0xff]
        %v1044 = vld [vmem:[#allocation3 + $0x50] sm:$0xff]
        %v1045 = vld [vmem:[#allocation3 + $0x58] sm:$0xff]
        %v1046 = vld [vmem:[#allocation3 + $0x60] sm:$0xff]
        %v1047 = vld [vmem:[#allocation3 + $0x68] sm:$0xff]
        %v1048 = vld [vmem:[#allocation3 + $0x70] sm:$0xff]
        %v1049 = vld [vmem:[#allocation3 + $0x78] sm:$0xff]
        %v1050 = vld [vmem:[#allocation3 + $0x80] sm:$0xff]
        %v1051 = vld [vmem:[#allocation3 + $0x88] sm:$0xff]
        %v1052 = vld [vmem:[#allocation3 + $0x90] sm:$0xff]
        %v1053 = vld [vmem:[#allocation3 + $0x98] sm:$0xff]
        %v1054 = vld [vmem:[#allocation3 + $0xa0] sm:$0xff]
        %v1055 = vld [vmem:[#allocation3 + $0xa8] sm:$0xff]
        %v1056 = vld [vmem:[#allocation3 + $0xb0] sm:$0xff]
        %v1057 = vld [vmem:[#allocation3 + $0xb8] sm:$0xff]
        %v1058 = vld [vmem:[#allocation3 + $0xc0] sm:$0xff]
        %v1059 = vld [vmem:[#allocation3 + $0xc8] sm:$0xff]
        %v1060 = vld [vmem:[#allocation3 + $0xd0] sm:$0xff]
        %v1061 = vld [vmem:[%s6] sm:$0xff]
        %1063 = vset.pattern.permute.xlu0 0
        %1064 = vperm.xlu0 %1063, %v1061
        %v1065 = vpop.permute.xlu0 %1064
        %v1068 = vsel %vm755, %v1033, 0
        %1070 = vmatpush.msra.mxu0 0.0
        %1071 = vmatpush.msra.mxu0 0.0
        %1072 = vmatpush.msra.mxu0 0.0
        %1073 = vmatpush.msra.mxu0 0.0
        %1074 = vmatpush.msra.mxu0 0.0
        %1075 = vmatpush.msra.mxu0 0.0
        %1076 = vmatpush.msra.mxu0 0.0
        %1077 = vmatpush.msra.mxu0 %v1058
        %1078 = vmatpush.msra.mxu0 %v1055
        %1079 = vmatpush.msra.mxu0 %v1052
        %1080 = vmatpush.msra.mxu0 %v1049
        %1081 = vmatpush.msra.mxu0 %v1046
        %1082 = vmatpush.msra.mxu0 %v1043
        %1083 = vmatpush.msra.mxu0 %v1040
        %1084 = vmatpush.msra.mxu0 %v1037
        %1085 = vmatpush.msra.mxu0 %v1034
        %1086 = vmatmul.f32.gmra.mxu0 %v1068
        %v1087 = vpop.f32.mrf.mxu0
        %v1088 = vadd.f32 %v1065, %v1087
        %1089 = vdwg.mxu0
        %1090 = vmatpush.msra.mxu0 0.0
        %1091 = vmatpush.msra.mxu0 0.0
        %1092 = vmatpush.msra.mxu0 0.0
        %1093 = vmatpush.msra.mxu0 0.0
        %1094 = vmatpush.msra.mxu0 0.0
        %1095 = vmatpush.msra.mxu0 0.0
        %1096 = vmatpush.msra.mxu0 0.0
        %1097 = vmatpush.msra.mxu0 %v1059
        %1098 = vmatpush.msra.mxu0 %v1056
        %1099 = vmatpush.msra.mxu0 %v1053
        %1100 = vmatpush.msra.mxu0 %v1050
        %1101 = vmatpush.msra.mxu0 %v1047
        %1102 = vmatpush.msra.mxu0 %v1044
        %1103 = vmatpush.msra.mxu0 %v1041
        %1104 = vmatpush.msra.mxu0 %v1038
        %1105 = vmatpush.msra.mxu0 %v1035
        %1106 = vmatmul.f32.gmra.mxu0 %v1068
        %v1107 = vpop.f32.mrf.mxu0
        %v1108 = vadd.f32 %v1065, %v1107
        %1109 = vdwg.mxu0
        %1110 = vmatpush.msra.mxu0 0.0
        %1111 = vmatpush.msra.mxu0 0.0
        %1112 = vmatpush.msra.mxu0 0.0
        %1113 = vmatpush.msra.mxu0 0.0
        %1114 = vmatpush.msra.mxu0 0.0
        %1115 = vmatpush.msra.mxu0 0.0
        %1116 = vmatpush.msra.mxu0 0.0
        %1117 = vmatpush.msra.mxu0 %v1060
        %1118 = vmatpush.msra.mxu0 %v1057
        %1119 = vmatpush.msra.mxu0 %v1054
        %1120 = vmatpush.msra.mxu0 %v1051
        %1121 = vmatpush.msra.mxu0 %v1048
        %1122 = vmatpush.msra.mxu0 %v1045
        %1123 = vmatpush.msra.mxu0 %v1042
        %1124 = vmatpush.msra.mxu0 %v1039
        %1125 = vmatpush.msra.mxu0 %v1036
        %1126 = vmatmul.f32.gmra.mxu0 %v1068
        %v1127 = vpop.f32.mrf.mxu0
        %v1128 = vadd.f32 %v1065, %v1127
        %1129 = vdwg.mxu0
        %v1130 = vmul.f32 %v1088, %v835
        %v1131 = vmul.f32 %v1108, %v836
        %v1132 = vmul.f32 %v1128, %v837
        %v1133 = vadd.f32 %v1130, %v1131
        %v1134 = vsel %vm439, %v1132, 0.0
        %v1135 = vadd.f32 %v1133, %v1134
        %1136 = vadd.xlane.f32.xlu0 %v1135
        %v1137 = vpop.xlane.xlu0 %1136
        %v1138 = vmul.f32 %v1137, 0.00390625
        %vm1139 = vcmp.gt.f32.partialorder %v434, 0.5
        %v1140 = vsel %vm1139, 1, 0
        %v1141 = vperm.slane %v1140, 0
        %v1142 = vperm.slane %v1140, 1
        %v1143 = vperm.slane %v1140, 2
        %vm1144 = vcmp.eq.s32.totalorder %v1141, 1
        %vm1145 = vcmp.eq.s32.totalorder %v1142, 1
        %vm1146 = vcmp.eq.s32.totalorder %v1143, 1
        %v1147 = vsel %vm1144, %v1088, -inf
        %v1148 = vsel %vm1145, %v1108, -inf
        %v1149 = vsel %vm1146, %v1128, -inf
        %v1150 = vsel %vm439, %v1149, -inf
        %v1151 = vmax.f32 %v1147, %v1148
        %v1152 = vmax.f32 %v1151, %v1150
        %1153 = vmax.xlane.f32.xlu0 %v1152
        %v1154 = vpop.xlane.xlu0 %1153
        %v1155 = vsel %vm621, %v1138, %v1154
        %v1156 = vld [vmem:[%s7] sm:$0xf]
        %vm1157 = vcmask 64512
        %v1159 = vsel %vm1157, %v1156, 0
        %1161 = vmatpush.msra.mxu0 0.0
        %1162 = vmatpush.msra.mxu0 0.0
        %1163 = vmatpush.msra.mxu0 0.0
        %1164 = vmatpush.msra.mxu0 0.0
        %1165 = vmatpush.msra.mxu0 0.0
        %1166 = vmatpush.msra.mxu0 0.0
        %1167 = vmatpush.msra.mxu0 0.0
        %1168 = vmatpush.msra.mxu0 0.0
        %1169 = vmatpush.msra.mxu0 0.0
        %1170 = vmatpush.msra.mxu0 0.0
        %1171 = vmatpush.msra.mxu0 0.0
        %1172 = vmatpush.msra.mxu0 0.0
        %1173 = vmatpush.msra.mxu0 0.0
        %1174 = vmatpush.msra.mxu0 0.0
        %1175 = vmatpush.msra.mxu0 0.0
        %1176 = vmatpush.msra.mxu0 %v1155
        %1177 = vmatmul.f32.gmra.mxu0 %v1159
        %v1178 = vpop.f32.mrf.mxu0
        %v1179 = vadd.f32 0.0, %v1178
        %1180 = vdwg.mxu0
        %v1181 = vmax.f32 %v1179, 0.0
        %v1182 = vld [vmem:[%s8] sm:$0xff]
        %vm1183 = vcmask 31744
        %v1185 = vsel %vm1183, %v1182, 0
        %vm1187 = vcmask 1043456
        %v1189 = vsel %vm1187, %v1181, 0
        %1191 = vmatpush.msra.mxu0 0.0
        %1192 = vmatpush.msra.mxu0 0.0
        %1193 = vmatpush.msra.mxu0 0.0
        %1194 = vmatpush.msra.mxu0 0.0
        %1195 = vmatpush.msra.mxu0 0.0
        %1196 = vmatpush.msra.mxu0 0.0
        %1197 = vmatpush.msra.mxu0 0.0
        %1198 = vmatpush.msra.mxu0 0.0
        %1199 = vmatpush.msra.mxu0 0.0
        %1200 = vmatpush.msra.mxu0 0.0
        %1201 = vmatpush.msra.mxu0 0.0
        %1202 = vmatpush.msra.mxu0 0.0
        %1203 = vmatpush.msra.mxu0 0.0
        %1204 = vmatpush.msra.mxu0 0.0
        %1205 = vmatpush.msra.mxu0 0.0
        %1206 = vmatpush.msra.mxu0 %v1189
        %1207 = vmatmul.f32.gmra.mxu0 %v1185
        %v1208 = vpop.f32.mrf.mxu0
        %v1209 = vadd.f32 0.0, %v1208
        %1210 = vdwg.mxu0
        %v1211 = vsub.f32 0.0, %v1209
        %v1212 = vmul.f32 %v1211, 1.442695
        %v1213 = vpow.pop %v1212
        %v1214 = vadd.f32 %v1213, 1.0
        %v1215 = vrcp.pop %v1214
        %v1216 = vmul.f32 %v1214, %v1215
        %v1217 = vsub.f32 1.0, %v1216
        %v1218 = vmul.f32 %v1215, %v1217
        %v1219 = vadd.f32 %v1215, %v1218
        %vm1220 = vweird.f32 %v1214
        %vm1221 = vweird.f32 %v1215
        %vm1222 = vmor %vm1220, %vm1221
        %v1223 = vsel %vm1222, %v1215, %v1219
        %v1224 = vand.u32 2147483647, %v1214
        %vm1225 = vcmp.eq.f32.partialorder %v1224, 8.507059e+37
        %v1226 = vand.u32 %v1214, 2147483648
        %v1227 = vor.u32 1.1754944e-38, %v1226
        %v1228 = vsel %vm1225, %v1227, %v1223
        %v1229 = vmul.f32 1.0, %v1228
        %v1230 = vlaneseq
        %v1231 = vshrl.u32 %v1230, 7
        %v1232 = vlaneseq
        %v1233 = vand.u32 %v1232, 127
        %vm1234 = vcmp.eq.s32.totalorder %v1231, %v1233
        %v1235 = vsel %vm1234, 1, 0
        %v1236 = vcvt.s32.f32 %v1235
        %1238 = vset.pattern.permute.xlu0 0
        %1239 = vperm.xlu0 %1238, %v1229
        %v1240 = vpop.permute.xlu0 %1239
        %v1242 = vmul.f32 %v1236, %v1240
        %v1243 = vsel %vm1157, %v1242, 0.0
        %v1244 = vrot.slane %v1243, 4
        %v1245 = vadd.f32 %v1243, %v1244
        %v1246 = vrot.slane %v1245, 2
        %v1247 = vadd.f32 %v1245, %v1246
        %v1248 = vrot.slane %v1247, 1
        %v1249 = vadd.f32 %v1247, %v1248
        %1250 = vset.pattern.permute.xlu0 1
        %1251 = vperm.xlu0 %1250, %v1229
        %v1252 = vpop.permute.xlu0 %1251
        %v1254 = vmul.f32 %v1236, %v1252
        %v1255 = vsel %vm1157, %v1254, 0.0
        %v1256 = vrot.slane %v1255, 4
        %v1257 = vadd.f32 %v1255, %v1256
        %v1258 = vrot.slane %v1257, 2
        %v1259 = vadd.f32 %v1257, %v1258
        %v1260 = vrot.slane %v1259, 1
        %v1261 = vadd.f32 %v1259, %v1260
        %v1262 = vld [vmem:[%s9] sm:$0xff]
        %v1263 = vmul.f32 %v1262, %v1249
        %v1264 = vld [vmem:[%s10] sm:$0xff]
        %v1265 = vmul.f32 %v1264, %v1261
        %v1266 = vadd.f32 %v1263, %v1265
        %v1267 = vld [vmem:[%s11] sm:$0xff]
        %1269 = vset.pattern.permute.xlu0 0
        %1270 = vperm.xlu0 %1269, %v1267
        %v1271 = vpop.permute.xlu0 %1270
        %v1274 = vsel %vm1157, %v1266, 0
        %1276 = vmatpush.msra.mxu0 0.0
        %1277 = vmatpush.msra.mxu0 0.0
        %1278 = vmatpush.msra.mxu0 0.0
        %1279 = vmatpush.msra.mxu0 0.0
        %1280 = vmatpush.msra.mxu0 0.0
        %1281 = vmatpush.msra.mxu0 0.0
        %1282 = vmatpush.msra.mxu0 0.0
        %1283 = vmatpush.msra.mxu0 0.0
        %1284 = vmatpush.msra.mxu0 0.0
        %1285 = vmatpush.msra.mxu0 0.0
        %1286 = vmatpush.msra.mxu0 0.0
        %1287 = vmatpush.msra.mxu0 0.0
        %1288 = vmatpush.msra.mxu0 0.0
        %1289 = vmatpush.msra.mxu0 0.0
        %1290 = vmatpush.msra.mxu0 0.0
        %1291 = vmatpush.msra.mxu0 %v432
        %1292 = vmatmul.f32.gmra.mxu0 %v1274
        %v1293 = vpop.f32.mrf.mxu0
        %v1294 = vadd.f32 %v1271, %v1293
        %1295 = vdwg.mxu0
        %1296 = vmatpush.msra.mxu0 0.0
        %1297 = vmatpush.msra.mxu0 0.0
        %1298 = vmatpush.msra.mxu0 0.0
        %1299 = vmatpush.msra.mxu0 0.0
        %1300 = vmatpush.msra.mxu0 0.0
        %1301 = vmatpush.msra.mxu0 0.0
        %1302 = vmatpush.msra.mxu0 0.0
        %1303 = vmatpush.msra.mxu0 0.0
        %1304 = vmatpush.msra.mxu0 0.0
        %1305 = vmatpush.msra.mxu0 0.0
        %1306 = vmatpush.msra.mxu0 0.0
        %1307 = vmatpush.msra.mxu0 0.0
        %1308 = vmatpush.msra.mxu0 0.0
        %1309 = vmatpush.msra.mxu0 0.0
        %1310 = vmatpush.msra.mxu0 0.0
        %1311 = vmatpush.msra.mxu0 %v433
        %1312 = vmatmul.f32.gmra.mxu0 %v1274
        %v1313 = vpop.f32.mrf.mxu0
        %v1314 = vadd.f32 %v1271, %v1313
        %1315 = vdwg.mxu0
        %1316 = vst [vmem:[%s431] sm:$0xff] %v1294
        %1317 = vst [vmem:[%s431 + $0x8] sm:$0xff] %v1314
        %s1318 = sand.u32 %s294, 1
        %s1319 = scalar_lea.sflag [#allocation6], %s1318
        %s1320 = sand.u32 %s294, 1
        %s1321 = smul.addr %s1320, 16
        %s1322 = scalar_lea.vmem [#allocation7], %s1321
        // Predicated region
        $region73: #{tpu_custom_call.1} parent=67 // pred_check
          %p1323 = pneg %p304
        $region74: #{tpu_custom_call.1} parent=67 // pred_check_branch
          %1325 = sbr.rel (%p1323) target = $region76
        $region75: #{tpu_custom_call.1} parent=67 // pred_region
          %1327 = vsyncadd %s1319, 0
          %s1328 = smul.addr %s29, 2
          %s1329 = smul.addr %s1328, 8
          %s1330 = scalar_lea.hbm %s12, %s1329
          %s1332 = sshll.u32 %s1322, 4
          %s1333 = int_to_ptr.vmem [resolvable:$true] %s1332
          %s1334 = sshll.u32 %s1330, 4
          %s1335 = int_to_ptr.hbm [resolvable:$true] %s1334
          %1337 = dma.vmem_to_hbm [thread:$0]  %s1333, 256, %s1335, %s1319
        $region76: #{tpu_custom_call.1} parent=67 // pred_fallthru
          _
      $region68: #{tpu_custom_call.1} parent=5 // pred_fallthru
        _
      %p1338 = scmp.le.s32.totalorder 2, %s24
      // Predicated region
      $region77: #{tpu_custom_call.1} parent=5 // pred_check
        %p1339 = pneg %p1338
      $region78: #{tpu_custom_call.1} parent=5 // pred_check_branch
        %1341 = sbr.rel (%p1339) target = $region80
      $region79: #{tpu_custom_call.1} parent=5 // pred_region
        %s1342 = ssub.s32 %s24, 2
        // Predicated region
        $region81: #{tpu_custom_call.1} parent=79 // pred_check
          %p1343 = pneg %p310
        $region82: #{tpu_custom_call.1} parent=79 // pred_check_branch
          %1345 = sbr.rel (%p1343) target = $region84
        $region83: #{tpu_custom_call.1} parent=79 // pred_region
          %s1346 = sand.u32 %s295, 1
          %s1347 = scalar_lea.sflag [#allocation6], %s1346
          %s1348 = sand.u32 %s295, 1
          %s1349 = smul.addr %s1348, 16
          %s1350 = scalar_lea.vmem [#allocation7], %s1349
          %1352 = dma.done %s1347, 256
        $region84: #{tpu_custom_call.1} parent=79 // pred_fallthru
          _
      $region80: #{tpu_custom_call.1} parent=5 // pred_fallthru
        _
    $region6: #{tpu_custom_call.1} parent=1 // loop_footer
      %s28 = sadd.s32 1, %s24
    $region7: #{tpu_custom_call.1} parent=1 // loop_footer_branch
      %23 = sbr.rel target = $region3
    $region8: #{tpu_custom_call.1} parent=1 // loop_exit
      _
    %1353 = vsyncpa [#allocation5], 1
    %s1354 = scalar_lea.sflag [#allocation5], 1
    %1355 = vsyncpa %s1354, 1
    %1356 = vsyncpa [#allocation6], 1
    %s1357 = scalar_lea.sflag [#allocation6], 1
    %1358 = vsyncpa %s1357, 1

</llo_original>
